<compile_context>
chip_gen: v7x
topology: tpu7x:2x2x1
jax: 0.10.0
libtpu: 0.0.40
codegen_flags: <defaults>
</compile_context>

<pallas_src>
import math

import jax
import jax.numpy as jnp
from jax.experimental import pallas as pl
from jax.experimental.pallas import tpu as pltpu


# ----------------------------------------------------------------------------
# helpers
# ----------------------------------------------------------------------------
def _round_up(x, m):
    return (x + m - 1) // m * m


def _vmem_tile_bytes(shape, itemsize):
    """Approximate VMEM footprint of a tile, accounting for (8,128) padding."""
    shape = tuple(shape)
    if len(shape) == 1:
        shape = (1,) + shape
    lead = 1
    for d in shape[:-2]:
        lead *= d
    return lead * _round_up(shape[-2], 8) * _round_up(shape[-1], 128) * itemsize


def _vmem_budget_bytes():
    """Generation-aware budget: ~48 MiB on v7x (64 MiB phys), ~96 MiB on v5e/v6e."""
    cap = 64 << 20
    try:
        cap = int(pltpu.get_tpu_info().vmem_capacity_bytes)
    except Exception:
        pass
    return max(32 << 20, (cap * 3) // 4), cap


# ----------------------------------------------------------------------------
# Pallas kernel: fused (patches @ weight) + bias, f32 accumulation
# ----------------------------------------------------------------------------
def _matmul_bias_kernel(p_ref, w_ref, b_ref, o_ref, acc_ref):
    """p_ref : (tm, tk)   im2col patch tile (compute dtype)
       w_ref : (tk, cout) folded dense weight tile (compute dtype)
       b_ref : (1, cout)  bias (f32)
       o_ref : (tm, cout) output tile (f32)
       acc_ref: (tm, cout) f32 accumulator scratch (resident across K steps)."""
    @pl.when(pl.program_id(1) == 0)
    def _():
        acc_ref[...] = jnp.zeros_like(acc_ref)

    acc_ref[...] += jnp.dot(p_ref[...], w_ref[...],
                            preferred_element_type=jnp.float32)

    @pl.when(pl.program_id(1) == pl.num_programs(1) - 1)
    def _():
        o_ref[...] = (acc_ref[...] + b_ref[...]).astype(o_ref.dtype)


# ----------------------------------------------------------------------------
# Wrapper: Conv2dlr.forward  (weight = (B @ A).view(...); F.conv2d(...))
# ----------------------------------------------------------------------------
def conv2dlr_forward(x, weightA, weightB, bias=None, *,
                     stride=(1, 1), padding=(0, 0), dilation=(1, 1), groups=1,
                     compute_dtype=jnp.bfloat16):
    """x: (N, Cin, H, W) NCHW.  weightA: (rank, Cin, kh, kw).
       weightB: (Cout, rank, 1, 1).  bias: (Cout,) or None.  Returns NCHW f32."""
    assert groups == 1, "grouped convolution not supported (module asserts too)"
    sh, sw = stride
    ph, pw = padding
    dh, dw = dilation
    n, cin, h, w = x.shape
    rank = weightA.shape[0]
    cout = weightB.shape[0]
    kh, kw = weightA.shape[2], weightA.shape[3]

    ho = (h + 2 * ph - dh * (kh - 1) - 1) // sh + 1
    wo = (w + 2 * pw - dw * (kw - 1) - 1) // sw + 1
    assert ho >= 1 and wo >= 1, "kernel larger than (padded) input"

    # ---- fold the low-rank factors once (tiny f32 matmul), 2-D weight -------
    w_full = (weightB.reshape(cout, rank).astype(jnp.float32)
              @ weightA.reshape(rank, -1).astype(jnp.float32))
    w_full = w_full.reshape(cout, cin, kh, kw)
    K = kh * kw * cin
    # w2d[(i*kw + j)*cin + c, o] = w_full[o, c, i, j]
    w2d = jnp.transpose(w_full, (2, 3, 1, 0)).reshape(K, cout).astype(compute_dtype)
    b_vec = bias if bias is not None else jnp.zeros((cout,), jnp.float32)
    b2d = b_vec.astype(jnp.float32).reshape(1, cout)

    # ---- im2col patches (stride/dilation applied here; K = kh*kw*cin) -------
    xh = jnp.transpose(x, (0, 2, 3, 1)).astype(compute_dtype)            # NHWC
    xh = jnp.pad(xh, ((0, 0), (ph, ph), (pw, pw), (0, 0)))
    taps = []
    for i in range(kh):
        for j in range(kw):
            taps.append(xh[:, i * dh: i * dh + (ho - 1) * sh + 1: sh,
                              j * dw: j * dw + (wo - 1) * sw + 1: sw, :])
    patches = jnp.concatenate(taps, axis=-1).reshape(n * ho * wo, K)

    M = n * ho * wo
    comp_isize = jnp.dtype(compute_dtype).itemsize

    # ---- K tiling (only needed for very deep contractions) ------------------
    if K > 2048:
        tk = 1024                        # multiple of 128 (partial last-dim block)
        k_pad = _round_up(K, tk)
    else:
        tk = K                           # full-extent block, no constraint
        k_pad = K
    nk = k_pad // tk

    # ---- M tiling: VMEM-bounded, >= 2 parallel grid steps for v7x megacore --
    budget, vmem_cap = _vmem_budget_bytes()

    def est(tm_):
        e = 2 * _vmem_tile_bytes((tm_, tk), comp_isize)      # patch tile (x2 buf)
        e += 2 * _vmem_tile_bytes((tk, cout), comp_isize)    # weight tile
        e += 2 * _vmem_tile_bytes((tm_, cout), 4)            # output tile
        e += _vmem_tile_bytes((tm_, cout), 4)                # accumulator scratch
        e += _vmem_tile_bytes((1, cout), 4)                  # bias
        return e

    tm = min(512, _round_up(M, 8))
    if pl.cdiv(M, tm) < 2 and M > 8:          # keep both v7x TensorCores busy
        tm = _round_up(pl.cdiv(M, 2), 8)
    while tm > 8 and est(tm) > budget:
        tm = _round_up(tm // 2, 8)
    m_pad = _round_up(M, tm)
    nm = m_pad // tm

    if m_pad != M or k_pad != K:
        patches = jnp.pad(patches, ((0, m_pad - M), (0, k_pad - K)))
    if k_pad != K:
        w2d = jnp.pad(w2d, ((0, k_pad - K), (0, 0)))

    vmem_limit = int(min(vmem_cap, max(32 << 20, 2 * est(tm))))

    cost = pl.CostEstimate(
        flops=int(2 * M * K * cout),
        transcendentals=0,
        bytes_accessed=int(M * K * comp_isize + K * cout * comp_isize
                           + cout * 4 + M * cout * 4))

    y = pl.pallas_call(
        _matmul_bias_kernel,
        out_shape=jax.ShapeDtypeStruct((m_pad, cout), jnp.float32),
        grid_spec=pltpu.PrefetchScalarGridSpec(
            num_scalar_prefetch=0,
            grid=(nm, nk),
            in_specs=[
                pl.BlockSpec((tm, tk), lambda m, k: (m, k)),
                pl.BlockSpec((tk, cout), lambda m, k: (k, 0)),
                pl.BlockSpec((1, cout), lambda m, k: (0, 0)),
            ],
            out_specs=pl.BlockSpec((tm, cout), lambda m, k: (m, 0)),
            scratch_shapes=[pltpu.VMEM((tm, cout), jnp.float32)]),
        compiler_params=pltpu.CompilerParams(
            dimension_semantics=("parallel", "arbitrary"),
            vmem_limit_bytes=vmem_limit),
        cost_estimate=cost,
    )(patches, w2d, b2d)

    # ---- back to NCHW --------------------------------------------------------
    y = y[:M].reshape(n, ho, wo, cout)
    return jnp.transpose(y, (0, 3, 1, 2))


# ----------------------------------------------------------------------------
# Pure-JAX reference (numerical check, no torch)
# ----------------------------------------------------------------------------
def _reference_conv2dlr(x, weightA, weightB, bias, stride, padding, dilation,
                        compute_dtype=jnp.float32):
    cout, rank = weightB.shape[0], weightA.shape[0]
    w_full = (weightB.reshape(cout, rank).astype(jnp.float32)
              @ weightA.reshape(rank, -1).astype(jnp.float32))
    w_full = w_full.reshape(cout, *weightA.shape[1:])
    y = jax.lax.conv_general_dilated(
        x.astype(compute_dtype), w_full.astype(compute_dtype),
        window_strides=stride,
        padding=[(padding[0], padding[0]), (padding[1], padding[1])],
        rhs_dilation=dilation,
        dimension_numbers=("NCHW", "OIHW", "NCHW"),
        preferred_element_type=jnp.float32,
        precision=jax.lax.Precision.HIGHEST)
    if bias is not None:
        y = y + bias.astype(jnp.float32).reshape(1, -1, 1, 1)
    return y


# ----------------------------------------------------------------------------
# Deterministic parameter init (mirrors Conv2dlr.reset_parameters)
# ----------------------------------------------------------------------------
def init_conv2dlr_params(key, in_channels, out_channels, kernel_size, rank):
    kh = kw = kernel_size
    k_a, k_b, k_w2 = jax.random.split(key, 3)
    stdv = 1.0 / math.sqrt(in_channels * kh * kw)
    weightA = jax.random.uniform(k_a, (rank, in_channels, kh, kw), jnp.float32,
                                 minval=-stdv, maxval=stdv)
    bias = jax.random.uniform(k_b, (out_channels,), jnp.float32,
                              minval=-stdv, maxval=stdv)
    stdv_b = 1.0 / math.sqrt(rank * kh * kw)
    weightB = jax.random.uniform(k_w2, (out_channels, rank, 1, 1), jnp.float32,
                                 minval=-stdv_b, maxval=stdv_b)
    return weightA, weightB, bias


if __name__ == "__main__":
    key = jax.random.PRNGKey(0)
    k_param, k_in = jax.random.split(key)

    in_ch, out_ch, ksize, rank = 4, 16, 5, 8        # rank <= min(4*5*5, 16)
    weightA, weightB, bias = init_conv2dlr_params(k_param, in_ch, out_ch, ksize, rank)
    x = jax.random.normal(k_in, (4, in_ch, 16, 16), dtype=jnp.float32)

    # Case 1: stride 1, no padding, f32 compute (exact path, tight tolerance).
    fwd1 = jax.jit(lambda *a: conv2dlr_forward(*a, stride=(1, 1), padding=(0, 0),
                                               compute_dtype=jnp.float32))
    out1 = jax.block_until_ready(fwd1(x, weightA, weightB, bias))
    ref1 = jax.block_until_ready(
        _reference_conv2dlr(x, weightA, weightB, bias, (1, 1), (0, 0), (1, 1)))
    assert out1.shape == (4, out_ch, 12, 12), out1.shape
    assert jnp.allclose(out1, ref1, atol=1e-3, rtol=1e-3), \
        float(jnp.max(jnp.abs(out1 - ref1)))

    # Case 2: stride 2, padding 2, default bf16 operands / f32 accumulation.
    fwd2 = jax.jit(lambda *a: conv2dlr_forward(*a, stride=(2, 2), padding=(2, 2)))
    out2 = jax.block_until_ready(fwd2(x, weightA, weightB, bias))
    ref2 = jax.block_until_ready(
        _reference_conv2dlr(x, weightA, weightB, bias, (2, 2), (2, 2), (1, 1),
                            compute_dtype=jnp.bfloat16))
    assert out2.shape == (4, out_ch, 8, 8), out2.shape
    assert jnp.allclose(out2, ref2, atol=2e-2, rtol=2e-2), \
        float(jnp.max(jnp.abs(out2 - ref2)))

    print("KERNEL_OK")
</pallas_src>

<mosaic_0001>
module attributes {stable_mosaic.version = 11 : i64} {
  func.func @_matmul_bias_kernel(%arg0: i32, %arg1: i32, %arg2: memref<512x100xf32, #tpu.memory_space<vmem>>, %arg3: memref<100x16xf32, #tpu.memory_space<vmem>>, %arg4: memref<1x16xf32, #tpu.memory_space<vmem>>, %arg5: memref<512x16xf32, #tpu.memory_space<vmem>>, %arg6: memref<512x16xf32, #tpu.memory_space<vmem>>) attributes {dimension_semantics = [#tpu.dimension_semantics<parallel>, #tpu.dimension_semantics<arbitrary>], iteration_bounds = array<i64: 2, 1>, scalar_prefetch = 0 : i64, scratch_operands = 1 : i64, tpu.core_type = #tpu.core_type<tc>, window_params = [{transform_indices = @transform_0, window_bounds = array<i64: 512, 100>}, {transform_indices = @transform_1, window_bounds = array<i64: 100, 16>}, {pipeline_mode = #tpu.pipeline_mode<synchronous>, transform_indices = @transform_2, window_bounds = array<i64: 1, 16>}, {transform_indices = @transform_3, window_bounds = array<i64: 512, 16>}]} {
    %c0_i32 = arith.constant 0 : i32
    %0 = arith.cmpi eq, %arg1, %c0_i32 : i32
    %1 = arith.extui %0 : i1 to i32
    %c0_i32_0 = arith.constant 0 : i32
    %2 = arith.cmpi ne, %1, %c0_i32_0 : i32
    scf.if %2 {
      %cst_10 = arith.constant 0.000000e+00 : f32
      %12 = vector.broadcast %cst_10 : f32 to vector<512x16xf32>
      %c0_11 = arith.constant 0 : index
      %c0_12 = arith.constant 0 : index
      %13 = vector.load %arg6[%c0_11, %c0_12] : memref<512x16xf32, #tpu.memory_space<vmem>>, vector<512x16xf32>
      tpu.vector_store %arg6[%c0_11, %c0_12], %12 {strides = array<i32>} : memref<512x16xf32, #tpu.memory_space<vmem>>, vector<512x16xf32>,
    } else {
    }
    %c0 = arith.constant 0 : index
    %c0_1 = arith.constant 0 : index
    %3 = vector.load %arg6[%c0, %c0_1] : memref<512x16xf32, #tpu.memory_space<vmem>>, vector<512x16xf32>
    %c0_2 = arith.constant 0 : index
    %c0_3 = arith.constant 0 : index
    %4 = vector.load %arg2[%c0_2, %c0_3] : memref<512x100xf32, #tpu.memory_space<vmem>>, vector<512x100xf32>
    %c0_4 = arith.constant 0 : index
    %c0_5 = arith.constant 0 : index
    %5 = vector.load %arg3[%c0_4, %c0_5] : memref<100x16xf32, #tpu.memory_space<vmem>>, vector<100x16xf32>
    %cst = arith.constant dense<0.000000e+00> : vector<512x16xf32>
    %6 = tpu.matmul %4, %5, %cst {dimension_numbers = #tpu.dot_dimension_numbers<[1], [0], [0], [1], [0, 0, 1, 1], [], []>} : vector<512x100xf32>, vector<100x16xf32>, vector<512x16xf32> -> vector<512x16xf32>
    %7 = arith.addf %3, %6 : vector<512x16xf32>
    %c0_6 = arith.constant 0 : index
    %c0_7 = arith.constant 0 : index
    %8 = vector.load %arg6[%c0_6, %c0_7] : memref<512x16xf32, #tpu.memory_space<vmem>>, vector<512x16xf32>
    tpu.vector_store %arg6[%c0_6, %c0_7], %7 {strides = array<i32>} : memref<512x16xf32, #tpu.memory_space<vmem>>, vector<512x16xf32>,
    %c0_i32_8 = arith.constant 0 : i32
    %9 = arith.cmpi eq, %arg1, %c0_i32_8 : i32
    %10 = arith.extui %9 : i1 to i32
    %c0_i32_9 = arith.constant 0 : i32
    %11 = arith.cmpi ne, %10, %c0_i32_9 : i32
    scf.if %11 {
      %c0_10 = arith.constant 0 : index
      %c0_11 = arith.constant 0 : index
      %12 = vector.load %arg6[%c0_10, %c0_11] : memref<512x16xf32, #tpu.memory_space<vmem>>, vector<512x16xf32>
      %c0_12 = arith.constant 0 : index
      %c0_13 = arith.constant 0 : index
      %13 = vector.load %arg4[%c0_12, %c0_13] : memref<1x16xf32, #tpu.memory_space<vmem>>, vector<1x16xf32>
      %14 = vector.broadcast %13 : vector<1x16xf32> to vector<512x16xf32>
      %15 = arith.addf %12, %14 : vector<512x16xf32>
      %c0_14 = arith.constant 0 : index
      %c0_15 = arith.constant 0 : index
      %16 = vector.load %arg5[%c0_14, %c0_15] : memref<512x16xf32, #tpu.memory_space<vmem>>, vector<512x16xf32>
      tpu.vector_store %arg5[%c0_14, %c0_15], %15 {strides = array<i32>} : memref<512x16xf32, #tpu.memory_space<vmem>>, vector<512x16xf32>,
    } else {
    }
    return
  }
  func.func @transform_0(%arg0: i32, %arg1: i32) -> (i32, i32) {
    %c0_i32 = arith.constant 0 : i32
    return %arg0, %arg1 : i32, i32
  }
  func.func @transform_1(%arg0: i32, %arg1: i32) -> (i32, i32) {
    %c0_i32 = arith.constant 0 : i32
    %c0_i32_0 = arith.constant 0 : i32
    return %arg1, %c0_i32 : i32, i32
  }
  func.func @transform_2(%arg0: i32, %arg1: i32) -> (i32, i32) {
    %c0_i32 = arith.constant 0 : i32
    %c0_i32_0 = arith.constant 0 : i32
    %c0_i32_1 = arith.constant 0 : i32
    return %c0_i32, %c0_i32_0 : i32, i32
  }
  func.func @transform_3(%arg0: i32, %arg1: i32) -> (i32, i32) {
    %c0_i32 = arith.constant 0 : i32
    %c0_i32_0 = arith.constant 0 : i32
    return %arg0, %c0_i32 : i32, i32
  }
}

</mosaic_0001>

<llo_original>
// kernel: _lambda_.1
$region0: #{_lambda_.1}
  #allocation0 [shape = 'u32[]', space=smem, size = 0x4, offset = 0x4, fixed_abs, tag = 'smem constant byte address 0x4 - core index']
  #allocation1 [shape = 'u32[144,128]{1,0:T(1,128)}', space=vmem, size = 0x12000, scoped, tag = 'internal scratch']
  #allocation2 [shape = 'f32[512,16]{1,0:T(8,128)}', space=vmem, size = 0x40000, scoped, tag = 'scratch operand']
  %s0 = inlined_call_operand.vmem [shape: f32[1024,100], index: 0, kind: input, shape index: {}]
  %s1 = inlined_call_operand.vmem [shape: f32[100,16], index: 1, kind: input, shape index: {}]
  %s2 = inlined_call_operand.vmem [shape: f32[1,16], index: 2, kind: input, shape index: {}]
  %s3 = inlined_call_operand.vmem [shape: f32[1024,16], index: 3, kind: output, shape index: {}]
  %s4 = sld [smem:[#allocation0]]
  $region53: #{_lambda_.1} parent=0
    _
  %s6 = ssub.s32 1, %s4
  %s7 = scalar_select 0, %s6, %s4
  loop: start=0, step=1, limit=4
  $region2: #{_lambda_.1} parent=0 // loop_pre_header
    _
  $region3: #{_lambda_.1} parent=0 // loop_header
    %s9 = sphi 0, %s13
    %p10 = scmp.ge.s32.totalorder %s9, 4
    %s16 = sphi 0, %s28
    %s17 = sphi 0, %s24
    %s18 = sphi 0, %s16
    %s19 = sphi 0, %s17
    %s20 = sphi 0, %s18
    %s21 = sphi 0, %s19
    %s33 = sphi 0, %s35
    %s36 = sphi 0, %s33
    %s37 = sphi 0, %s36
    %s53 = sphi 0, %s37
    %s59 = sphi 0, %s61
    %s62 = sphi 0, %s59
    %s63 = sphi 0, %s62
    %s79 = sphi 0, %s63
    %s83 = sphi 0, %s83
    %s85 = sphi 0, %s83
    %s86 = sphi 0, %s85
    %s100 = sphi 0, %s86
    %s106 = sphi 0, %s108
    %s109 = sphi 0, %s106
    %s110 = sphi 0, %s109
    %s126 = sphi 0, %s110
  $region4: #{_lambda_.1} parent=0 // loop_header_branch
    %12 = sbr.rel (%p10) target = $region8
  $region5: #{_lambda_.1} parent=0 // loop_body
    %s14 = ssub.s32 %s9, 1
    %s15 = ssub.s32 %s9, 2
    %s22 = sadd.s32 1, %s17
    %p23 = scmp.ge.s32.totalorder %s22, 1
    %s24 = scalar_select %p23, 0, %s22
    %s25 = sadd.s32 1, %s16
    %s26 = scalar_select %p23, %s25, %s16
    %p27 = scmp.ge.s32.totalorder %s26, 2
    %s28 = scalar_select %p27, 0, %s26
    %s29 = ssub.s32 %s16, %s28
    %s30 = ssub.s32 %s17, %s24
    %s31 = sor.u32 %s29, %s30
    %p32 = scmp.eq.s32.totalorder %s31, 0
    %s34 = sadd.s32 %s33, 1
    %s35 = scalar_select %p32, %s33, %s34
    %p38 = pneg %p32
    %p39 = scmp.eq.s32.totalorder %s9, 1
    %p40 = por %p38, %p39
    %p41 = scmp.ne.s32.totalorder %s33, %s36
    %p42 = scmp.eq.s32.totalorder %s9, 0
    %p43 = por %p41, %p42
    %p44 = scmp.ne.s32.totalorder %s33, %s36
    %p45 = scmp.eq.s32.totalorder %s14, 1
    %p46 = por %p44, %p45
    %p47 = scmp.ne.s32.totalorder %s36, %s37
    %p48 = scmp.eq.s32.totalorder %s14, 0
    %p49 = por %p47, %p48
    %p50 = scmp.ne.s32.totalorder %s36, %s37
    %p51 = scmp.eq.s32.totalorder %s15, 1
    %p52 = por %p50, %p51
    %p54 = scmp.ne.s32.totalorder %s37, %s53
    %p55 = scmp.eq.s32.totalorder %s15, 0
    %p56 = por %p54, %p55
    %s57 = ssub.s32 %s17, %s24
    %p58 = scmp.eq.s32.totalorder %s57, 0
    %s60 = sadd.s32 %s59, 1
    %s61 = scalar_select %p58, %s59, %s60
    %p64 = pneg %p58
    %p65 = scmp.eq.s32.totalorder %s9, 1
    %p66 = por %p64, %p65
    %p67 = scmp.ne.s32.totalorder %s59, %s62
    %p68 = scmp.eq.s32.totalorder %s9, 0
    %p69 = por %p67, %p68
    %p70 = scmp.ne.s32.totalorder %s59, %s62
    %p71 = scmp.eq.s32.totalorder %s14, 1
    %p72 = por %p70, %p71
    %p73 = scmp.ne.s32.totalorder %s62, %s63
    %p74 = scmp.eq.s32.totalorder %s14, 0
    %p75 = por %p73, %p74
    %p76 = scmp.ne.s32.totalorder %s62, %s63
    %p77 = scmp.eq.s32.totalorder %s15, 1
    %p78 = por %p76, %p77
    %p80 = scmp.ne.s32.totalorder %s63, %s79
    %p81 = scmp.eq.s32.totalorder %s15, 0
    %p82 = por %p80, %p81
    %s84 = sadd.s32 %s83, 1
    %p87 = scmp.eq.s32.totalorder %s9, 1
    %p88 = scmp.ne.s32.totalorder %s83, %s85
    %p89 = scmp.eq.s32.totalorder %s9, 0
    %p90 = por %p88, %p89
    %p91 = scmp.ne.s32.totalorder %s83, %s85
    %p92 = scmp.eq.s32.totalorder %s14, 1
    %p93 = por %p91, %p92
    %p94 = scmp.ne.s32.totalorder %s85, %s86
    %p95 = scmp.eq.s32.totalorder %s14, 0
    %p96 = por %p94, %p95
    %p97 = scmp.ne.s32.totalorder %s85, %s86
    %p98 = scmp.eq.s32.totalorder %s15, 1
    %p99 = por %p97, %p98
    %p101 = scmp.ne.s32.totalorder %s86, %s100
    %p102 = scmp.eq.s32.totalorder %s15, 0
    %p103 = por %p101, %p102
    %s104 = ssub.s32 %s16, %s28
    %p105 = scmp.eq.s32.totalorder %s104, 0
    %s107 = sadd.s32 %s106, 1
    %s108 = scalar_select %p105, %s106, %s107
    %p111 = pneg %p105
    %p112 = scmp.eq.s32.totalorder %s9, 1
    %p113 = por %p111, %p112
    %p114 = scmp.ne.s32.totalorder %s106, %s109
    %p115 = scmp.eq.s32.totalorder %s9, 0
    %p116 = por %p114, %p115
    %p117 = scmp.ne.s32.totalorder %s106, %s109
    %p118 = scmp.eq.s32.totalorder %s14, 1
    %p119 = por %p117, %p118
    %p120 = scmp.ne.s32.totalorder %s109, %s110
    %p121 = scmp.eq.s32.totalorder %s14, 0
    %p122 = por %p120, %p121
    %p123 = scmp.ne.s32.totalorder %s109, %s110
    %p124 = scmp.eq.s32.totalorder %s15, 1
    %p125 = por %p123, %p124
    %p127 = scmp.ne.s32.totalorder %s110, %s126
    %p128 = scmp.eq.s32.totalorder %s15, 0
    %p129 = por %p127, %p128
    %p130 = scmp.le.s32.totalorder 1, %s9
    %p131 = scmp.lt.s32.totalorder %s9, 3
    %p132 = pnand %p130, %p131
    %p133 = pneg %p132
    // Predicated region
    $region9: #{_lambda_.1} parent=5 // pred_check
      _
    $region10: #{_lambda_.1} parent=5 // pred_check_branch
      %135 = sbr.rel (%p132) target = $region12
    $region11: #{_lambda_.1} parent=5 // pred_region
      %s136 = ssub.s32 %s9, 1
      // Predicated region
      $region13: #{_lambda_.1} parent=11 // pred_check
        %p137 = pneg %p75
      $region14: #{_lambda_.1} parent=11 // pred_check_branch
        %139 = sbr.rel (%p137) target = $region16
      $region15: #{_lambda_.1} parent=11 // pred_region
        %s140 = smul.u32 13, %s19
        %p141 = scmp.lt.s32.totalorder %s140, 12
        %s142 = scalar_select %p141, %s140, 12
        %s143 = smul.addr %s142, 8
        %s144 = scalar_lea.vmem %s1, %s143
        %s145 = smul.u32 13, %s19
      $region16: #{_lambda_.1} parent=11 // pred_fallthru
        _
      // Predicated region
      $region17: #{_lambda_.1} parent=11 // pred_check
        %p146 = pneg %p96
      $region18: #{_lambda_.1} parent=11 // pred_check_branch
        %148 = sbr.rel (%p146) target = $region20
      $region19: #{_lambda_.1} parent=11 // pred_region
        _
      $region20: #{_lambda_.1} parent=11 // pred_fallthru
        _
    $region12: #{_lambda_.1} parent=5 // pred_fallthru
      _
    %p149 = scmp.lt.s32.totalorder %s9, 2
    // Predicated region
    $region21: #{_lambda_.1} parent=5 // pred_check
      %p150 = pneg %p149
    $region22: #{_lambda_.1} parent=5 // pred_check_branch
      %152 = sbr.rel (%p150) target = $region24
    $region23: #{_lambda_.1} parent=5 // pred_region
      // Predicated region
      $region25: #{_lambda_.1} parent=23 // pred_check
        %p153 = pneg %p43
      $region26: #{_lambda_.1} parent=23 // pred_check_branch
        %155 = sbr.rel (%p153) target = $region28
      $region27: #{_lambda_.1} parent=23 // pred_region
        %s156 = smul.u32 64, %s16
        %p157 = scmp.lt.s32.totalorder %s156, 127
        %s158 = scalar_select %p157, %s156, 127
        %p159 = scmp.lt.s32.totalorder %s17, 0
        %s160 = scalar_select %p159, %s17, 0
        %s161 = sadd.s32 %s160, %s158
        %s162 = smul.addr %s161, 8
        %s163 = scalar_lea.vmem %s0, %s162
        %s164 = smul.u32 64, %s16
      $region28: #{_lambda_.1} parent=23 // pred_fallthru
        _
    $region24: #{_lambda_.1} parent=5 // pred_fallthru
      _
    %p165 = scmp.le.s32.totalorder 1, %s9
    %p166 = scmp.lt.s32.totalorder %s9, 3
    %p167 = pnand %p165, %p166
    %p168 = pneg %p167
    // Predicated region
    $region29: #{_lambda_.1} parent=5 // pred_check
      _
    $region30: #{_lambda_.1} parent=5 // pred_check_branch
      %170 = sbr.rel (%p167) target = $region32
    $region31: #{_lambda_.1} parent=5 // pred_region
      %s171 = ssub.s32 %s9, 1
      %s172 = smul.u32 64, %s18
      %p173 = scmp.lt.s32.totalorder %s172, 127
      %s174 = scalar_select %p173, %s172, 127
      %p175 = scmp.lt.s32.totalorder %s19, 0
      %s176 = scalar_select %p175, %s19, 0
      %s177 = sadd.s32 %s176, %s174
      %s178 = smul.addr %s177, 8
      %s179 = scalar_lea.vmem %s0, %s178
      %p180 = pneg %p49
      %p181 = pneg %p46
      %s182 = smul.u32 13, %s19
      %p183 = scmp.lt.s32.totalorder %s182, 12
      %s184 = scalar_select %p183, %s182, 12
      %s185 = smul.addr %s184, 8
      %s186 = scalar_lea.vmem %s1, %s185
      %p187 = pneg %p75
      %p188 = pneg %p72
      %p189 = pneg %p96
      %p190 = pneg %p93
      %p191 = pneg %p122
      %p192 = pneg %p119
      %s193 = smul.u32 64, %s18
      %p194 = scmp.lt.s32.totalorder %s193, 127
      %s195 = scalar_select %p194, %s193, 127
      %s196 = smul.addr %s195, 8
      %s197 = scalar_lea.vmem %s3, %s196
      %s198 = smul.u32 64, %s18
      %p199 = scmp.lt.s32.totalorder %s198, 127
      %s200 = scalar_select %p199, %s198, 127
      %p201 = scmp.lt.s32.totalorder %s19, 0
      %s202 = scalar_select %p201, %s19, 0
      %s203 = sadd.s32 %s202, %s200
      %s204 = smul.addr %s203, 8
      %s205 = scalar_lea.vmem %s0, %s204
      %s206 = smul.u32 64, %s18
      %s207 = smul.u32 13, %s19
      %p208 = scmp.lt.s32.totalorder %s207, 12
      %s209 = scalar_select %p208, %s207, 12
      %s210 = smul.addr %s209, 8
      %s211 = scalar_lea.vmem %s1, %s210
      %s212 = smul.u32 13, %s19
      %s213 = smul.u32 64, %s18
      %p214 = scmp.lt.s32.totalorder %s213, 127
      %s215 = scalar_select %p214, %s213, 127
      %s216 = smul.addr %s215, 8
      %s217 = scalar_lea.vmem %s3, %s216
      %s218 = smul.u32 64, %s18
      %p219 = scmp.eq.s32.totalorder %s19, 0
      // Predicated region
      $region33: #{_lambda_.1} parent=31 // pred_check
        %p220 = pneg %p219
      $region34: #{_lambda_.1} parent=31 // pred_check_branch
        %222 = sbr.rel (%p220) target = $region36
      $region35: #{_lambda_.1} parent=31 // pred_region
        %vm223 = vcmask 130048
        %224 = vst.msk [vmem:[#allocation2] sm:$0xff] %vm223, 0.0
        %225 = vst.msk [vmem:[#allocation2 + $0x8] sm:$0xff] %vm223, 0.0
        %226 = vst.msk [vmem:[#allocation2 + $0x10] sm:$0xff] %vm223, 0.0
        %227 = vst.msk [vmem:[#allocation2 + $0x18] sm:$0xff] %vm223, 0.0
        %228 = vst.msk [vmem:[#allocation2 + $0x20] sm:$0xff] %vm223, 0.0
        %229 = vst.msk [vmem:[#allocation2 + $0x28] sm:$0xff] %vm223, 0.0
        %230 = vst.msk [vmem:[#allocation2 + $0x30] sm:$0xff] %vm223, 0.0
        %231 = vst.msk [vmem:[#allocation2 + $0x38] sm:$0xff] %vm223, 0.0
        %232 = vst.msk [vmem:[#allocation2 + $0x40] sm:$0xff] %vm223, 0.0
        %233 = vst.msk [vmem:[#allocation2 + $0x48] sm:$0xff] %vm223, 0.0
        %234 = vst.msk [vmem:[#allocation2 + $0x50] sm:$0xff] %vm223, 0.0
        %235 = vst.msk [vmem:[#allocation2 + $0x58] sm:$0xff] %vm223, 0.0
        %236 = vst.msk [vmem:[#allocation2 + $0x60] sm:$0xff] %vm223, 0.0
        %237 = vst.msk [vmem:[#allocation2 + $0x68] sm:$0xff] %vm223, 0.0
        %238 = vst.msk [vmem:[#allocation2 + $0x70] sm:$0xff] %vm223, 0.0
        %239 = vst.msk [vmem:[#allocation2 + $0x78] sm:$0xff] %vm223, 0.0
        %240 = vst.msk [vmem:[#allocation2 + $0x80] sm:$0xff] %vm223, 0.0
        %241 = vst.msk [vmem:[#allocation2 + $0x88] sm:$0xff] %vm223, 0.0
        %242 = vst.msk [vmem:[#allocation2 + $0x90] sm:$0xff] %vm223, 0.0
        %243 = vst.msk [vmem:[#allocation2 + $0x98] sm:$0xff] %vm223, 0.0
        %244 = vst.msk [vmem:[#allocation2 + $0xa0] sm:$0xff] %vm223, 0.0
        %245 = vst.msk [vmem:[#allocation2 + $0xa8] sm:$0xff] %vm223, 0.0
        %246 = vst.msk [vmem:[#allocation2 + $0xb0] sm:$0xff] %vm223, 0.0
        %247 = vst.msk [vmem:[#allocation2 + $0xb8] sm:$0xff] %vm223, 0.0
        %248 = vst.msk [vmem:[#allocation2 + $0xc0] sm:$0xff] %vm223, 0.0
        %249 = vst.msk [vmem:[#allocation2 + $0xc8] sm:$0xff] %vm223, 0.0
        %250 = vst.msk [vmem:[#allocation2 + $0xd0] sm:$0xff] %vm223, 0.0
        %251 = vst.msk [vmem:[#allocation2 + $0xd8] sm:$0xff] %vm223, 0.0
        %252 = vst.msk [vmem:[#allocation2 + $0xe0] sm:$0xff] %vm223, 0.0
        %253 = vst.msk [vmem:[#allocation2 + $0xe8] sm:$0xff] %vm223, 0.0
        %254 = vst.msk [vmem:[#allocation2 + $0xf0] sm:$0xff] %vm223, 0.0
        %255 = vst.msk [vmem:[#allocation2 + $0xf8] sm:$0xff] %vm223, 0.0
        %256 = vst.msk [vmem:[#allocation2 + $0x100] sm:$0xff] %vm223, 0.0
        %257 = vst.msk [vmem:[#allocation2 + $0x108] sm:$0xff] %vm223, 0.0
        %258 = vst.msk [vmem:[#allocation2 + $0x110] sm:$0xff] %vm223, 0.0
        %259 = vst.msk [vmem:[#allocation2 + $0x118] sm:$0xff] %vm223, 0.0
        %260 = vst.msk [vmem:[#allocation2 + $0x120] sm:$0xff] %vm223, 0.0
        %261 = vst.msk [vmem:[#allocation2 + $0x128] sm:$0xff] %vm223, 0.0
        %262 = vst.msk [vmem:[#allocation2 + $0x130] sm:$0xff] %vm223, 0.0
        %263 = vst.msk [vmem:[#allocation2 + $0x138] sm:$0xff] %vm223, 0.0
        %264 = vst.msk [vmem:[#allocation2 + $0x140] sm:$0xff] %vm223, 0.0
        %265 = vst.msk [vmem:[#allocation2 + $0x148] sm:$0xff] %vm223, 0.0
        %266 = vst.msk [vmem:[#allocation2 + $0x150] sm:$0xff] %vm223, 0.0
        %267 = vst.msk [vmem:[#allocation2 + $0x158] sm:$0xff] %vm223, 0.0
        %268 = vst.msk [vmem:[#allocation2 + $0x160] sm:$0xff] %vm223, 0.0
        %269 = vst.msk [vmem:[#allocation2 + $0x168] sm:$0xff] %vm223, 0.0
        %270 = vst.msk [vmem:[#allocation2 + $0x170] sm:$0xff] %vm223, 0.0
        %271 = vst.msk [vmem:[#allocation2 + $0x178] sm:$0xff] %vm223, 0.0
        %272 = vst.msk [vmem:[#allocation2 + $0x180] sm:$0xff] %vm223, 0.0
        %273 = vst.msk [vmem:[#allocation2 + $0x188] sm:$0xff] %vm223, 0.0
        %274 = vst.msk [vmem:[#allocation2 + $0x190] sm:$0xff] %vm223, 0.0
        %275 = vst.msk [vmem:[#allocation2 + $0x198] sm:$0xff] %vm223, 0.0
        %276 = vst.msk [vmem:[#allocation2 + $0x1a0] sm:$0xff] %vm223, 0.0
        %277 = vst.msk [vmem:[#allocation2 + $0x1a8] sm:$0xff] %vm223, 0.0
        %278 = vst.msk [vmem:[#allocation2 + $0x1b0] sm:$0xff] %vm223, 0.0
        %279 = vst.msk [vmem:[#allocation2 + $0x1b8] sm:$0xff] %vm223, 0.0
        %280 = vst.msk [vmem:[#allocation2 + $0x1c0] sm:$0xff] %vm223, 0.0
        %281 = vst.msk [vmem:[#allocation2 + $0x1c8] sm:$0xff] %vm223, 0.0
        %282 = vst.msk [vmem:[#allocation2 + $0x1d0] sm:$0xff] %vm223, 0.0
        %283 = vst.msk [vmem:[#allocation2 + $0x1d8] sm:$0xff] %vm223, 0.0
        %284 = vst.msk [vmem:[#allocation2 + $0x1e0] sm:$0xff] %vm223, 0.0
        %285 = vst.msk [vmem:[#allocation2 + $0x1e8] sm:$0xff] %vm223, 0.0
        %286 = vst.msk [vmem:[#allocation2 + $0x1f0] sm:$0xff] %vm223, 0.0
        %287 = vst.msk [vmem:[#allocation2 + $0x1f8] sm:$0xff] %vm223, 0.0
      $region36: #{_lambda_.1} parent=31 // pred_fallthru
        _
      %v288 = vld [vmem:[#allocation2] sm:$0xff]
      %v289 = vld [vmem:[#allocation2 + $0x8] sm:$0xff]
      %v290 = vld [vmem:[#allocation2 + $0x10] sm:$0xff]
      %v291 = vld [vmem:[#allocation2 + $0x18] sm:$0xff]
      %v292 = vld [vmem:[#allocation2 + $0x20] sm:$0xff]
      %v293 = vld [vmem:[#allocation2 + $0x28] sm:$0xff]
      %v294 = vld [vmem:[#allocation2 + $0x30] sm:$0xff]
      %v295 = vld [vmem:[#allocation2 + $0x38] sm:$0xff]
      %v296 = vld [vmem:[#allocation2 + $0x40] sm:$0xff]
      %v297 = vld [vmem:[#allocation2 + $0x48] sm:$0xff]
      %v298 = vld [vmem:[#allocation2 + $0x50] sm:$0xff]
      %v299 = vld [vmem:[#allocation2 + $0x58] sm:$0xff]
      %v300 = vld [vmem:[#allocation2 + $0x60] sm:$0xff]
      %v301 = vld [vmem:[#allocation2 + $0x68] sm:$0xff]
      %v302 = vld [vmem:[#allocation2 + $0x70] sm:$0xff]
      %v303 = vld [vmem:[#allocation2 + $0x78] sm:$0xff]
      %v304 = vld [vmem:[#allocation2 + $0x80] sm:$0xff]
      %v305 = vld [vmem:[#allocation2 + $0x88] sm:$0xff]
      %v306 = vld [vmem:[#allocation2 + $0x90] sm:$0xff]
      %v307 = vld [vmem:[#allocation2 + $0x98] sm:$0xff]
      %v308 = vld [vmem:[#allocation2 + $0xa0] sm:$0xff]
      %v309 = vld [vmem:[#allocation2 + $0xa8] sm:$0xff]
      %v310 = vld [vmem:[#allocation2 + $0xb0] sm:$0xff]
      %v311 = vld [vmem:[#allocation2 + $0xb8] sm:$0xff]
      %v312 = vld [vmem:[#allocation2 + $0xc0] sm:$0xff]
      %v313 = vld [vmem:[#allocation2 + $0xc8] sm:$0xff]
      %v314 = vld [vmem:[#allocation2 + $0xd0] sm:$0xff]
      %v315 = vld [vmem:[#allocation2 + $0xd8] sm:$0xff]
      %v316 = vld [vmem:[#allocation2 + $0xe0] sm:$0xff]
      %v317 = vld [vmem:[#allocation2 + $0xe8] sm:$0xff]
      %v318 = vld [vmem:[#allocation2 + $0xf0] sm:$0xff]
      %v319 = vld [vmem:[#allocation2 + $0xf8] sm:$0xff]
      %v320 = vld [vmem:[#allocation2 + $0x100] sm:$0xff]
      %v321 = vld [vmem:[#allocation2 + $0x108] sm:$0xff]
      %v322 = vld [vmem:[#allocation2 + $0x110] sm:$0xff]
      %v323 = vld [vmem:[#allocation2 + $0x118] sm:$0xff]
      %v324 = vld [vmem:[#allocation2 + $0x120] sm:$0xff]
      %v325 = vld [vmem:[#allocation2 + $0x128] sm:$0xff]
      %v326 = vld [vmem:[#allocation2 + $0x130] sm:$0xff]
      %v327 = vld [vmem:[#allocation2 + $0x138] sm:$0xff]
      %v328 = vld [vmem:[#allocation2 + $0x140] sm:$0xff]
      %v329 = vld [vmem:[#allocation2 + $0x148] sm:$0xff]
      %v330 = vld [vmem:[#allocation2 + $0x150] sm:$0xff]
      %v331 = vld [vmem:[#allocation2 + $0x158] sm:$0xff]
      %v332 = vld [vmem:[#allocation2 + $0x160] sm:$0xff]
      %v333 = vld [vmem:[#allocation2 + $0x168] sm:$0xff]
      %v334 = vld [vmem:[#allocation2 + $0x170] sm:$0xff]
      %v335 = vld [vmem:[#allocation2 + $0x178] sm:$0xff]
      %v336 = vld [vmem:[#allocation2 + $0x180] sm:$0xff]
      %v337 = vld [vmem:[#allocation2 + $0x188] sm:$0xff]
      %v338 = vld [vmem:[#allocation2 + $0x190] sm:$0xff]
      %v339 = vld [vmem:[#allocation2 + $0x198] sm:$0xff]
      %v340 = vld [vmem:[#allocation2 + $0x1a0] sm:$0xff]
      %v341 = vld [vmem:[#allocation2 + $0x1a8] sm:$0xff]
      %v342 = vld [vmem:[#allocation2 + $0x1b0] sm:$0xff]
      %v343 = vld [vmem:[#allocation2 + $0x1b8] sm:$0xff]
      %v344 = vld [vmem:[#allocation2 + $0x1c0] sm:$0xff]
      %v345 = vld [vmem:[#allocation2 + $0x1c8] sm:$0xff]
      %v346 = vld [vmem:[#allocation2 + $0x1d0] sm:$0xff]
      %v347 = vld [vmem:[#allocation2 + $0x1d8] sm:$0xff]
      %v348 = vld [vmem:[#allocation2 + $0x1e0] sm:$0xff]
      %v349 = vld [vmem:[#allocation2 + $0x1e8] sm:$0xff]
      %v350 = vld [vmem:[#allocation2 + $0x1f0] sm:$0xff]
      %v351 = vld [vmem:[#allocation2 + $0x1f8] sm:$0xff]
      %v352 = vld [vmem:[%s205] sm:$0xff]
      %v353 = vld [vmem:[%s205 + $0x8] sm:$0xff]
      %v354 = vld [vmem:[%s205 + $0x10] sm:$0xff]
      %v355 = vld [vmem:[%s205 + $0x18] sm:$0xff]
      %v356 = vld [vmem:[%s205 + $0x20] sm:$0xff]
      %v357 = vld [vmem:[%s205 + $0x28] sm:$0xff]
      %v358 = vld [vmem:[%s205 + $0x30] sm:$0xff]
      %v359 = vld [vmem:[%s205 + $0x38] sm:$0xff]
      %v360 = vld [vmem:[%s205 + $0x40] sm:$0xff]
      %v361 = vld [vmem:[%s205 + $0x48] sm:$0xff]
      %v362 = vld [vmem:[%s205 + $0x50] sm:$0xff]
      %v363 = vld [vmem:[%s205 + $0x58] sm:$0xff]
      %v364 = vld [vmem:[%s205 + $0x60] sm:$0xff]
      %v365 = vld [vmem:[%s205 + $0x68] sm:$0xff]
      %v366 = vld [vmem:[%s205 + $0x70] sm:$0xff]
      %v367 = vld [vmem:[%s205 + $0x78] sm:$0xff]
      %v368 = vld [vmem:[%s205 + $0x80] sm:$0xff]
      %v369 = vld [vmem:[%s205 + $0x88] sm:$0xff]
      %v370 = vld [vmem:[%s205 + $0x90] sm:$0xff]
      %v371 = vld [vmem:[%s205 + $0x98] sm:$0xff]
      %v372 = vld [vmem:[%s205 + $0xa0] sm:$0xff]
      %v373 = vld [vmem:[%s205 + $0xa8] sm:$0xff]
      %v374 = vld [vmem:[%s205 + $0xb0] sm:$0xff]
      %v375 = vld [vmem:[%s205 + $0xb8] sm:$0xff]
      %v376 = vld [vmem:[%s205 + $0xc0] sm:$0xff]
      %v377 = vld [vmem:[%s205 + $0xc8] sm:$0xff]
      %v378 = vld [vmem:[%s205 + $0xd0] sm:$0xff]
      %v379 = vld [vmem:[%s205 + $0xd8] sm:$0xff]
      %v380 = vld [vmem:[%s205 + $0xe0] sm:$0xff]
      %v381 = vld [vmem:[%s205 + $0xe8] sm:$0xff]
      %v382 = vld [vmem:[%s205 + $0xf0] sm:$0xff]
      %v383 = vld [vmem:[%s205 + $0xf8] sm:$0xff]
      %v384 = vld [vmem:[%s205 + $0x100] sm:$0xff]
      %v385 = vld [vmem:[%s205 + $0x108] sm:$0xff]
      %v386 = vld [vmem:[%s205 + $0x110] sm:$0xff]
      %v387 = vld [vmem:[%s205 + $0x118] sm:$0xff]
      %v388 = vld [vmem:[%s205 + $0x120] sm:$0xff]
      %v389 = vld [vmem:[%s205 + $0x128] sm:$0xff]
      %v390 = vld [vmem:[%s205 + $0x130] sm:$0xff]
      %v391 = vld [vmem:[%s205 + $0x138] sm:$0xff]
      %v392 = vld [vmem:[%s205 + $0x140] sm:$0xff]
      %v393 = vld [vmem:[%s205 + $0x148] sm:$0xff]
      %v394 = vld [vmem:[%s205 + $0x150] sm:$0xff]
      %v395 = vld [vmem:[%s205 + $0x158] sm:$0xff]
      %v396 = vld [vmem:[%s205 + $0x160] sm:$0xff]
      %v397 = vld [vmem:[%s205 + $0x168] sm:$0xff]
      %v398 = vld [vmem:[%s205 + $0x170] sm:$0xff]
      %v399 = vld [vmem:[%s205 + $0x178] sm:$0xff]
      %v400 = vld [vmem:[%s205 + $0x180] sm:$0xff]
      %v401 = vld [vmem:[%s205 + $0x188] sm:$0xff]
      %v402 = vld [vmem:[%s205 + $0x190] sm:$0xff]
      %v403 = vld [vmem:[%s205 + $0x198] sm:$0xff]
      %v404 = vld [vmem:[%s205 + $0x1a0] sm:$0xff]
      %v405 = vld [vmem:[%s205 + $0x1a8] sm:$0xff]
      %v406 = vld [vmem:[%s205 + $0x1b0] sm:$0xff]
      %v407 = vld [vmem:[%s205 + $0x1b8] sm:$0xff]
      %v408 = vld [vmem:[%s205 + $0x1c0] sm:$0xff]
      %v409 = vld [vmem:[%s205 + $0x1c8] sm:$0xff]
      %v410 = vld [vmem:[%s205 + $0x1d0] sm:$0xff]
      %v411 = vld [vmem:[%s205 + $0x1d8] sm:$0xff]
      %v412 = vld [vmem:[%s205 + $0x1e0] sm:$0xff]
      %v413 = vld [vmem:[%s205 + $0x1e8] sm:$0xff]
      %v414 = vld [vmem:[%s205 + $0x1f0] sm:$0xff]
      %v415 = vld [vmem:[%s205 + $0x1f8] sm:$0xff]
      %v416 = vld [vmem:[%s211] sm:$0xff]
      %v417 = vld [vmem:[%s211 + $0x8] sm:$0xff]
      %v418 = vld [vmem:[%s211 + $0x10] sm:$0xff]
      %v419 = vld [vmem:[%s211 + $0x18] sm:$0xff]
      %v420 = vld [vmem:[%s211 + $0x20] sm:$0xff]
      %v421 = vld [vmem:[%s211 + $0x28] sm:$0xff]
      %v422 = vld [vmem:[%s211 + $0x30] sm:$0xff]
      %v423 = vld [vmem:[%s211 + $0x38] sm:$0xff]
      %v424 = vld [vmem:[%s211 + $0x40] sm:$0xff]
      %v425 = vld [vmem:[%s211 + $0x48] sm:$0xff]
      %v426 = vld [vmem:[%s211 + $0x50] sm:$0xff]
      %v427 = vld [vmem:[%s211 + $0x58] sm:$0xff]
      %v428 = vld [vmem:[%s211 + $0x60] sm:$0xf]
      %vm429 = vcmask 818176
      %v431 = vsel %vm429, %v352, 0
      %v434 = vsel %vm429, %v353, 0
      %v437 = vsel %vm429, %v354, 0
      %v440 = vsel %vm429, %v355, 0
      %v443 = vsel %vm429, %v356, 0
      %v446 = vsel %vm429, %v357, 0
      %v449 = vsel %vm429, %v358, 0
      %v452 = vsel %vm429, %v359, 0
      %v455 = vsel %vm429, %v360, 0
      %v458 = vsel %vm429, %v361, 0
      %v461 = vsel %vm429, %v362, 0
      %v464 = vsel %vm429, %v363, 0
      %v467 = vsel %vm429, %v364, 0
      %v470 = vsel %vm429, %v365, 0
      %v473 = vsel %vm429, %v366, 0
      %v476 = vsel %vm429, %v367, 0
      %v479 = vsel %vm429, %v368, 0
      %v482 = vsel %vm429, %v369, 0
      %v485 = vsel %vm429, %v370, 0
      %v488 = vsel %vm429, %v371, 0
      %v491 = vsel %vm429, %v372, 0
      %v494 = vsel %vm429, %v373, 0
      %v497 = vsel %vm429, %v374, 0
      %v500 = vsel %vm429, %v375, 0
      %v503 = vsel %vm429, %v376, 0
      %v506 = vsel %vm429, %v377, 0
      %v509 = vsel %vm429, %v378, 0
      %v512 = vsel %vm429, %v379, 0
      %v515 = vsel %vm429, %v380, 0
      %v518 = vsel %vm429, %v381, 0
      %v521 = vsel %vm429, %v382, 0
      %v524 = vsel %vm429, %v383, 0
      %v527 = vsel %vm429, %v384, 0
      %v530 = vsel %vm429, %v385, 0
      %v533 = vsel %vm429, %v386, 0
      %v536 = vsel %vm429, %v387, 0
      %v539 = vsel %vm429, %v388, 0
      %v542 = vsel %vm429, %v389, 0
      %v545 = vsel %vm429, %v390, 0
      %v548 = vsel %vm429, %v391, 0
      %v551 = vsel %vm429, %v392, 0
      %v554 = vsel %vm429, %v393, 0
      %v557 = vsel %vm429, %v394, 0
      %v560 = vsel %vm429, %v395, 0
      %v563 = vsel %vm429, %v396, 0
      %v566 = vsel %vm429, %v397, 0
      %v569 = vsel %vm429, %v398, 0
      %v572 = vsel %vm429, %v399, 0
      %v575 = vsel %vm429, %v400, 0
      %v578 = vsel %vm429, %v401, 0
      %v581 = vsel %vm429, %v402, 0
      %v584 = vsel %vm429, %v403, 0
      %v587 = vsel %vm429, %v404, 0
      %v590 = vsel %vm429, %v405, 0
      %v593 = vsel %vm429, %v406, 0
      %v596 = vsel %vm429, %v407, 0
      %v599 = vsel %vm429, %v408, 0
      %v602 = vsel %vm429, %v409, 0
      %v605 = vsel %vm429, %v410, 0
      %v608 = vsel %vm429, %v411, 0
      %v611 = vsel %vm429, %v412, 0
      %v614 = vsel %vm429, %v413, 0
      %v617 = vsel %vm429, %v414, 0
      %v620 = vsel %vm429, %v415, 0
      %vm622 = vcmask 1043456
      %v624 = vsel %vm622, %v428, 0
      %626 = vmatprep.subr.mxu0 0.0
      %627 = vmatpush1.msra.mxu0 %v416
      %628 = vmatprep.subr.mxu0 0.0
      %629 = vmatpush1.msra.mxu0 %v417
      %630 = vmatprep.subr.mxu0 0.0
      %631 = vmatpush1.msra.mxu0 %v418
      %632 = vmatprep.subr.mxu0 0.0
      %633 = vmatpush1.msra.mxu0 %v419
      %634 = vmatprep.subr.mxu0 0.0
      %635 = vmatpush1.msra.mxu0 %v420
      %636 = vmatprep.subr.mxu0 0.0
      %637 = vmatpush1.msra.mxu0 %v421
      %638 = vmatprep.subr.mxu0 0.0
      %639 = vmatpush1.msra.mxu0 %v422
      %640 = vmatprep.subr.mxu0 0.0
      %641 = vmatpush1.msra.mxu0 %v423
      %642 = vmatprep.subr.mxu0 0.0
      %643 = vmatpush1.msra.mxu0 %v424
      %644 = vmatprep.subr.mxu0 0.0
      %645 = vmatpush1.msra.mxu0 %v425
      %646 = vmatprep.subr.mxu0 0.0
      %647 = vmatpush1.msra.mxu0 %v426
      %648 = vmatprep.subr.mxu0 0.0
      %649 = vmatpush1.msra.mxu0 %v427
      %650 = vmatprep.subr.mxu0 0.0
      %651 = vmatpush1.msra.mxu0 %v624
      %652 = vmatprep.subr.mxu0 0.0
      %653 = vmatpush1.msra.mxu0 0.0
      %654 = vmatprep.subr.mxu0 0.0
      %655 = vmatpush1.msra.mxu0 0.0
      %656 = vmatprep.subr.mxu0 0.0
      %657 = vmatpush1.msra.mxu0 0.0
      %658 = vmatprep.subr.mxu0 0.0
      %659 = vmatpush1.msra.mxu0 0.0
      %660 = vmatprep.subr.mxu0 0.0
      %661 = vmatpush1.msra.mxu0 0.0
      %662 = vmatprep.subr.mxu0 0.0
      %663 = vmatpush1.msra.mxu0 0.0
      %664 = vmatprep.subr.mxu0 0.0
      %665 = vmatpush1.msra.mxu0 0.0
      %666 = vmatprep.subr.mxu0 0.0
      %667 = vmatpush1.msra.mxu0 0.0
      %668 = vmatprep.subr.mxu0 0.0
      %669 = vmatpush1.msra.mxu0 0.0
      %670 = vmatprep.subr.mxu0 0.0
      %671 = vmatpush1.msra.mxu0 0.0
      %672 = vmatprep.subr.mxu0 0.0
      %673 = vmatpush1.msra.mxu0 0.0
      %674 = vmatprep.subr.mxu0 0.0
      %675 = vmatpush1.msra.mxu0 0.0
      %676 = vmatprep.subr.mxu0 0.0
      %677 = vmatpush1.msra.mxu0 0.0
      %678 = vmatprep.subr.mxu0 0.0
      %679 = vmatpush1.msra.mxu0 0.0
      %680 = vmatprep.subr.mxu0 0.0
      %681 = vmatpush1.msra.mxu0 0.0
      %682 = vmatprep.subr.mxu0 0.0
      %683 = vmatpush1.msra.mxu0 0.0
      %684 = vmatprep.subr.mxu0 0.0
      %685 = vmatpush1.msra.mxu0 0.0
      %686 = vmatprep.subr.mxu0 0.0
      %687 = vmatpush1.msra.mxu0 0.0
      %688 = vmatprep.subr.mxu0 0.0
      %689 = vmatpush1.msra.mxu0 0.0
      %690 = vmatprep.mubr.f32.mxu0 0.0
      %691 = vmatmul.mubr.f32.gmra.mrb[0].mxu0 %v431
      %v692 = vpop.f32.mrb[0].mxu0
      %v693 = vadd.f32 0.0, %v692
      %v694 = vpop.f32.mrb[0].mxu0
      %695 = vmatprep.mubr.f32.mxu0 0.0
      %696 = vmatmul.mubr.f32.gmra.mrb[0].mxu0 %v434
      %v697 = vpop.f32.mrb[0].mxu0
      %v698 = vadd.f32 0.0, %v697
      %v699 = vpop.f32.mrb[0].mxu0
      %700 = vmatprep.mubr.f32.mxu0 0.0
      %701 = vmatmul.mubr.f32.gmra.mrb[0].mxu0 %v437
      %v702 = vpop.f32.mrb[0].mxu0
      %v703 = vadd.f32 0.0, %v702
      %v704 = vpop.f32.mrb[0].mxu0
      %705 = vmatprep.mubr.f32.mxu0 0.0
      %706 = vmatmul.mubr.f32.gmra.mrb[0].mxu0 %v440
      %v707 = vpop.f32.mrb[0].mxu0
      %v708 = vadd.f32 0.0, %v707
      %v709 = vpop.f32.mrb[0].mxu0
      %710 = vmatprep.mubr.f32.mxu0 0.0
      %711 = vmatmul.mubr.f32.gmra.mrb[0].mxu0 %v443
      %v712 = vpop.f32.mrb[0].mxu0
      %v713 = vadd.f32 0.0, %v712
      %v714 = vpop.f32.mrb[0].mxu0
      %715 = vmatprep.mubr.f32.mxu0 0.0
      %716 = vmatmul.mubr.f32.gmra.mrb[0].mxu0 %v446
      %v717 = vpop.f32.mrb[0].mxu0
      %v718 = vadd.f32 0.0, %v717
      %v719 = vpop.f32.mrb[0].mxu0
      %720 = vmatprep.mubr.f32.mxu0 0.0
      %721 = vmatmul.mubr.f32.gmra.mrb[0].mxu0 %v449
      %v722 = vpop.f32.mrb[0].mxu0
      %v723 = vadd.f32 0.0, %v722
      %v724 = vpop.f32.mrb[0].mxu0
      %725 = vmatprep.mubr.f32.mxu0 0.0
      %726 = vmatmul.mubr.f32.gmra.mrb[0].mxu0 %v452
      %v727 = vpop.f32.mrb[0].mxu0
      %v728 = vadd.f32 0.0, %v727
      %v729 = vpop.f32.mrb[0].mxu0
      %730 = vmatprep.mubr.f32.mxu0 0.0
      %731 = vmatmul.mubr.f32.gmra.mrb[0].mxu0 %v455
      %v732 = vpop.f32.mrb[0].mxu0
      %v733 = vadd.f32 0.0, %v732
      %v734 = vpop.f32.mrb[0].mxu0
      %735 = vmatprep.mubr.f32.mxu0 0.0
      %736 = vmatmul.mubr.f32.gmra.mrb[0].mxu0 %v458
      %v737 = vpop.f32.mrb[0].mxu0
      %v738 = vadd.f32 0.0, %v737
      %v739 = vpop.f32.mrb[0].mxu0
      %740 = vmatprep.mubr.f32.mxu0 0.0
      %741 = vmatmul.mubr.f32.gmra.mrb[0].mxu0 %v461
      %v742 = vpop.f32.mrb[0].mxu0
      %v743 = vadd.f32 0.0, %v742
      %v744 = vpop.f32.mrb[0].mxu0
      %745 = vmatprep.mubr.f32.mxu0 0.0
      %746 = vmatmul.mubr.f32.gmra.mrb[0].mxu0 %v464
      %v747 = vpop.f32.mrb[0].mxu0
      %v748 = vadd.f32 0.0, %v747
      %v749 = vpop.f32.mrb[0].mxu0
      %750 = vmatprep.mubr.f32.mxu0 0.0
      %751 = vmatmul.mubr.f32.gmra.mrb[0].mxu0 %v467
      %v752 = vpop.f32.mrb[0].mxu0
      %v753 = vadd.f32 0.0, %v752
      %v754 = vpop.f32.mrb[0].mxu0
      %755 = vmatprep.mubr.f32.mxu0 0.0
      %756 = vmatmul.mubr.f32.gmra.mrb[0].mxu0 %v470
      %v757 = vpop.f32.mrb[0].mxu0
      %v758 = vadd.f32 0.0, %v757
      %v759 = vpop.f32.mrb[0].mxu0
      %760 = vmatprep.mubr.f32.mxu0 0.0
      %761 = vmatmul.mubr.f32.gmra.mrb[0].mxu0 %v473
      %v762 = vpop.f32.mrb[0].mxu0
      %v763 = vadd.f32 0.0, %v762
      %v764 = vpop.f32.mrb[0].mxu0
      %765 = vmatprep.mubr.f32.mxu0 0.0
      %766 = vmatmul.mubr.f32.gmra.mrb[0].mxu0 %v476
      %v767 = vpop.f32.mrb[0].mxu0
      %v768 = vadd.f32 0.0, %v767
      %v769 = vpop.f32.mrb[0].mxu0
      %770 = vmatprep.mubr.f32.mxu0 0.0
      %771 = vmatmul.mubr.f32.gmra.mrb[0].mxu0 %v479
      %v772 = vpop.f32.mrb[0].mxu0
      %v773 = vadd.f32 0.0, %v772
      %v774 = vpop.f32.mrb[0].mxu0
      %775 = vmatprep.mubr.f32.mxu0 0.0
      %776 = vmatmul.mubr.f32.gmra.mrb[0].mxu0 %v482
      %v777 = vpop.f32.mrb[0].mxu0
      %v778 = vadd.f32 0.0, %v777
      %v779 = vpop.f32.mrb[0].mxu0
      %780 = vmatprep.mubr.f32.mxu0 0.0
      %781 = vmatmul.mubr.f32.gmra.mrb[0].mxu0 %v485
      %v782 = vpop.f32.mrb[0].mxu0
      %v783 = vadd.f32 0.0, %v782
      %v784 = vpop.f32.mrb[0].mxu0
      %785 = vmatprep.mubr.f32.mxu0 0.0
      %786 = vmatmul.mubr.f32.gmra.mrb[0].mxu0 %v488
      %v787 = vpop.f32.mrb[0].mxu0
      %v788 = vadd.f32 0.0, %v787
      %v789 = vpop.f32.mrb[0].mxu0
      %790 = vmatprep.mubr.f32.mxu0 0.0
      %791 = vmatmul.mubr.f32.gmra.mrb[0].mxu0 %v491
      %v792 = vpop.f32.mrb[0].mxu0
      %v793 = vadd.f32 0.0, %v792
      %v794 = vpop.f32.mrb[0].mxu0
      %795 = vmatprep.mubr.f32.mxu0 0.0
      %796 = vmatmul.mubr.f32.gmra.mrb[0].mxu0 %v494
      %v797 = vpop.f32.mrb[0].mxu0
      %v798 = vadd.f32 0.0, %v797
      %v799 = vpop.f32.mrb[0].mxu0
      %800 = vmatprep.mubr.f32.mxu0 0.0
      %801 = vmatmul.mubr.f32.gmra.mrb[0].mxu0 %v497
      %v802 = vpop.f32.mrb[0].mxu0
      %v803 = vadd.f32 0.0, %v802
      %v804 = vpop.f32.mrb[0].mxu0
      %805 = vmatprep.mubr.f32.mxu0 0.0
      %806 = vmatmul.mubr.f32.gmra.mrb[0].mxu0 %v500
      %v807 = vpop.f32.mrb[0].mxu0
      %v808 = vadd.f32 0.0, %v807
      %v809 = vpop.f32.mrb[0].mxu0
      %810 = vmatprep.mubr.f32.mxu0 0.0
      %811 = vmatmul.mubr.f32.gmra.mrb[0].mxu0 %v503
      %v812 = vpop.f32.mrb[0].mxu0
      %v813 = vadd.f32 0.0, %v812
      %v814 = vpop.f32.mrb[0].mxu0
      %815 = vmatprep.mubr.f32.mxu0 0.0
      %816 = vmatmul.mubr.f32.gmra.mrb[0].mxu0 %v506
      %v817 = vpop.f32.mrb[0].mxu0
      %v818 = vadd.f32 0.0, %v817
      %v819 = vpop.f32.mrb[0].mxu0
      %820 = vmatprep.mubr.f32.mxu0 0.0
      %821 = vmatmul.mubr.f32.gmra.mrb[0].mxu0 %v509
      %v822 = vpop.f32.mrb[0].mxu0
      %v823 = vadd.f32 0.0, %v822
      %v824 = vpop.f32.mrb[0].mxu0
      %825 = vmatprep.mubr.f32.mxu0 0.0
      %826 = vmatmul.mubr.f32.gmra.mrb[0].mxu0 %v512
      %v827 = vpop.f32.mrb[0].mxu0
      %v828 = vadd.f32 0.0, %v827
      %v829 = vpop.f32.mrb[0].mxu0
      %830 = vmatprep.mubr.f32.mxu0 0.0
      %831 = vmatmul.mubr.f32.gmra.mrb[0].mxu0 %v515
      %v832 = vpop.f32.mrb[0].mxu0
      %v833 = vadd.f32 0.0, %v832
      %v834 = vpop.f32.mrb[0].mxu0
      %835 = vmatprep.mubr.f32.mxu0 0.0
      %836 = vmatmul.mubr.f32.gmra.mrb[0].mxu0 %v518
      %v837 = vpop.f32.mrb[0].mxu0
      %v838 = vadd.f32 0.0, %v837
      %v839 = vpop.f32.mrb[0].mxu0
      %840 = vmatprep.mubr.f32.mxu0 0.0
      %841 = vmatmul.mubr.f32.gmra.mrb[0].mxu0 %v521
      %v842 = vpop.f32.mrb[0].mxu0
      %v843 = vadd.f32 0.0, %v842
      %v844 = vpop.f32.mrb[0].mxu0
      %845 = vmatprep.mubr.f32.mxu0 0.0
      %846 = vmatmul.mubr.f32.gmra.mrb[0].mxu0 %v524
      %v847 = vpop.f32.mrb[0].mxu0
      %v848 = vadd.f32 0.0, %v847
      %v849 = vpop.f32.mrb[0].mxu0
      %850 = vmatprep.mubr.f32.mxu0 0.0
      %851 = vmatmul.mubr.f32.gmra.mrb[0].mxu0 %v527
      %v852 = vpop.f32.mrb[0].mxu0
      %v853 = vadd.f32 0.0, %v852
      %v854 = vpop.f32.mrb[0].mxu0
      %855 = vmatprep.mubr.f32.mxu0 0.0
      %856 = vmatmul.mubr.f32.gmra.mrb[0].mxu0 %v530
      %v857 = vpop.f32.mrb[0].mxu0
      %v858 = vadd.f32 0.0, %v857
      %v859 = vpop.f32.mrb[0].mxu0
      %860 = vmatprep.mubr.f32.mxu0 0.0
      %861 = vmatmul.mubr.f32.gmra.mrb[0].mxu0 %v533
      %v862 = vpop.f32.mrb[0].mxu0
      %v863 = vadd.f32 0.0, %v862
      %v864 = vpop.f32.mrb[0].mxu0
      %865 = vmatprep.mubr.f32.mxu0 0.0
      %866 = vmatmul.mubr.f32.gmra.mrb[0].mxu0 %v536
      %v867 = vpop.f32.mrb[0].mxu0
      %v868 = vadd.f32 0.0, %v867
      %v869 = vpop.f32.mrb[0].mxu0
      %870 = vmatprep.mubr.f32.mxu0 0.0
      %871 = vmatmul.mubr.f32.gmra.mrb[0].mxu0 %v539
      %v872 = vpop.f32.mrb[0].mxu0
      %v873 = vadd.f32 0.0, %v872
      %v874 = vpop.f32.mrb[0].mxu0
      %875 = vmatprep.mubr.f32.mxu0 0.0
      %876 = vmatmul.mubr.f32.gmra.mrb[0].mxu0 %v542
      %v877 = vpop.f32.mrb[0].mxu0
      %v878 = vadd.f32 0.0, %v877
      %v879 = vpop.f32.mrb[0].mxu0
      %880 = vmatprep.mubr.f32.mxu0 0.0
      %881 = vmatmul.mubr.f32.gmra.mrb[0].mxu0 %v545
      %v882 = vpop.f32.mrb[0].mxu0
      %v883 = vadd.f32 0.0, %v882
      %v884 = vpop.f32.mrb[0].mxu0
      %885 = vmatprep.mubr.f32.mxu0 0.0
      %886 = vmatmul.mubr.f32.gmra.mrb[0].mxu0 %v548
      %v887 = vpop.f32.mrb[0].mxu0
      %v888 = vadd.f32 0.0, %v887
      %v889 = vpop.f32.mrb[0].mxu0
      %890 = vmatprep.mubr.f32.mxu0 0.0
      %891 = vmatmul.mubr.f32.gmra.mrb[0].mxu0 %v551
      %v892 = vpop.f32.mrb[0].mxu0
      %v893 = vadd.f32 0.0, %v892
      %v894 = vpop.f32.mrb[0].mxu0
      %895 = vmatprep.mubr.f32.mxu0 0.0
      %896 = vmatmul.mubr.f32.gmra.mrb[0].mxu0 %v554
      %v897 = vpop.f32.mrb[0].mxu0
      %v898 = vadd.f32 0.0, %v897
      %v899 = vpop.f32.mrb[0].mxu0
      %900 = vmatprep.mubr.f32.mxu0 0.0
      %901 = vmatmul.mubr.f32.gmra.mrb[0].mxu0 %v557
      %v902 = vpop.f32.mrb[0].mxu0
      %v903 = vadd.f32 0.0, %v902
      %v904 = vpop.f32.mrb[0].mxu0
      %905 = vmatprep.mubr.f32.mxu0 0.0
      %906 = vmatmul.mubr.f32.gmra.mrb[0].mxu0 %v560
      %v907 = vpop.f32.mrb[0].mxu0
      %v908 = vadd.f32 0.0, %v907
      %v909 = vpop.f32.mrb[0].mxu0
      %910 = vmatprep.mubr.f32.mxu0 0.0
      %911 = vmatmul.mubr.f32.gmra.mrb[0].mxu0 %v563
      %v912 = vpop.f32.mrb[0].mxu0
      %v913 = vadd.f32 0.0, %v912
      %v914 = vpop.f32.mrb[0].mxu0
      %915 = vmatprep.mubr.f32.mxu0 0.0
      %916 = vmatmul.mubr.f32.gmra.mrb[0].mxu0 %v566
      %v917 = vpop.f32.mrb[0].mxu0
      %v918 = vadd.f32 0.0, %v917
      %v919 = vpop.f32.mrb[0].mxu0
      %920 = vmatprep.mubr.f32.mxu0 0.0
      %921 = vmatmul.mubr.f32.gmra.mrb[0].mxu0 %v569
      %v922 = vpop.f32.mrb[0].mxu0
      %v923 = vadd.f32 0.0, %v922
      %v924 = vpop.f32.mrb[0].mxu0
      %925 = vmatprep.mubr.f32.mxu0 0.0
      %926 = vmatmul.mubr.f32.gmra.mrb[0].mxu0 %v572
      %v927 = vpop.f32.mrb[0].mxu0
      %v928 = vadd.f32 0.0, %v927
      %v929 = vpop.f32.mrb[0].mxu0
      %930 = vmatprep.mubr.f32.mxu0 0.0
      %931 = vmatmul.mubr.f32.gmra.mrb[0].mxu0 %v575
      %v932 = vpop.f32.mrb[0].mxu0
      %v933 = vadd.f32 0.0, %v932
      %v934 = vpop.f32.mrb[0].mxu0
      %935 = vmatprep.mubr.f32.mxu0 0.0
      %936 = vmatmul.mubr.f32.gmra.mrb[0].mxu0 %v578
      %v937 = vpop.f32.mrb[0].mxu0
      %v938 = vadd.f32 0.0, %v937
      %v939 = vpop.f32.mrb[0].mxu0
      %940 = vmatprep.mubr.f32.mxu0 0.0
      %941 = vmatmul.mubr.f32.gmra.mrb[0].mxu0 %v581
      %v942 = vpop.f32.mrb[0].mxu0
      %v943 = vadd.f32 0.0, %v942
      %v944 = vpop.f32.mrb[0].mxu0
      %945 = vmatprep.mubr.f32.mxu0 0.0
      %946 = vmatmul.mubr.f32.gmra.mrb[0].mxu0 %v584
      %v947 = vpop.f32.mrb[0].mxu0
      %v948 = vadd.f32 0.0, %v947
      %v949 = vpop.f32.mrb[0].mxu0
      %950 = vmatprep.mubr.f32.mxu0 0.0
      %951 = vmatmul.mubr.f32.gmra.mrb[0].mxu0 %v587
      %v952 = vpop.f32.mrb[0].mxu0
      %v953 = vadd.f32 0.0, %v952
      %v954 = vpop.f32.mrb[0].mxu0
      %955 = vmatprep.mubr.f32.mxu0 0.0
      %956 = vmatmul.mubr.f32.gmra.mrb[0].mxu0 %v590
      %v957 = vpop.f32.mrb[0].mxu0
      %v958 = vadd.f32 0.0, %v957
      %v959 = vpop.f32.mrb[0].mxu0
      %960 = vmatprep.mubr.f32.mxu0 0.0
      %961 = vmatmul.mubr.f32.gmra.mrb[0].mxu0 %v593
      %v962 = vpop.f32.mrb[0].mxu0
      %v963 = vadd.f32 0.0, %v962
      %v964 = vpop.f32.mrb[0].mxu0
      %965 = vmatprep.mubr.f32.mxu0 0.0
      %966 = vmatmul.mubr.f32.gmra.mrb[0].mxu0 %v596
      %v967 = vpop.f32.mrb[0].mxu0
      %v968 = vadd.f32 0.0, %v967
      %v969 = vpop.f32.mrb[0].mxu0
      %970 = vmatprep.mubr.f32.mxu0 0.0
      %971 = vmatmul.mubr.f32.gmra.mrb[0].mxu0 %v599
      %v972 = vpop.f32.mrb[0].mxu0
      %v973 = vadd.f32 0.0, %v972
      %v974 = vpop.f32.mrb[0].mxu0
      %975 = vmatprep.mubr.f32.mxu0 0.0
      %976 = vmatmul.mubr.f32.gmra.mrb[0].mxu0 %v602
      %v977 = vpop.f32.mrb[0].mxu0
      %v978 = vadd.f32 0.0, %v977
      %v979 = vpop.f32.mrb[0].mxu0
      %980 = vmatprep.mubr.f32.mxu0 0.0
      %981 = vmatmul.mubr.f32.gmra.mrb[0].mxu0 %v605
      %v982 = vpop.f32.mrb[0].mxu0
      %v983 = vadd.f32 0.0, %v982
      %v984 = vpop.f32.mrb[0].mxu0
      %985 = vmatprep.mubr.f32.mxu0 0.0
      %986 = vmatmul.mubr.f32.gmra.mrb[0].mxu0 %v608
      %v987 = vpop.f32.mrb[0].mxu0
      %v988 = vadd.f32 0.0, %v987
      %v989 = vpop.f32.mrb[0].mxu0
      %990 = vmatprep.mubr.f32.mxu0 0.0
      %991 = vmatmul.mubr.f32.gmra.mrb[0].mxu0 %v611
      %v992 = vpop.f32.mrb[0].mxu0
      %v993 = vadd.f32 0.0, %v992
      %v994 = vpop.f32.mrb[0].mxu0
      %995 = vmatprep.mubr.f32.mxu0 0.0
      %996 = vmatmul.mubr.f32.gmra.mrb[0].mxu0 %v614
      %v997 = vpop.f32.mrb[0].mxu0
      %v998 = vadd.f32 0.0, %v997
      %v999 = vpop.f32.mrb[0].mxu0
      %1000 = vmatprep.mubr.f32.mxu0 0.0
      %1001 = vmatmul.mubr.f32.gmra.mrb[0].mxu0 %v617
      %v1002 = vpop.f32.mrb[0].mxu0
      %v1003 = vadd.f32 0.0, %v1002
      %v1004 = vpop.f32.mrb[0].mxu0
      %1005 = vmatprep.mubr.f32.mxu0 0.0
      %1006 = vmatmul.mubr.f32.gmra.mrb[0].mxu0 %v620
      %v1007 = vpop.f32.mrb[0].mxu0
      %v1008 = vadd.f32 0.0, %v1007
      %v1009 = vpop.f32.mrb[0].mxu0
      %1010 = vdwg.mxu0
      %v1011 = vadd.f32 %v288, %v693
      %v1012 = vadd.f32 %v289, %v698
      %v1013 = vadd.f32 %v290, %v703
      %v1014 = vadd.f32 %v291, %v708
      %v1015 = vadd.f32 %v292, %v713
      %v1016 = vadd.f32 %v293, %v718
      %v1017 = vadd.f32 %v294, %v723
      %v1018 = vadd.f32 %v295, %v728
      %v1019 = vadd.f32 %v296, %v733
      %v1020 = vadd.f32 %v297, %v738
      %v1021 = vadd.f32 %v298, %v743
      %v1022 = vadd.f32 %v299, %v748
      %v1023 = vadd.f32 %v300, %v753
      %v1024 = vadd.f32 %v301, %v758
      %v1025 = vadd.f32 %v302, %v763
      %v1026 = vadd.f32 %v303, %v768
      %v1027 = vadd.f32 %v304, %v773
      %v1028 = vadd.f32 %v305, %v778
      %v1029 = vadd.f32 %v306, %v783
      %v1030 = vadd.f32 %v307, %v788
      %v1031 = vadd.f32 %v308, %v793
      %v1032 = vadd.f32 %v309, %v798
      %v1033 = vadd.f32 %v310, %v803
      %v1034 = vadd.f32 %v311, %v808
      %v1035 = vadd.f32 %v312, %v813
      %v1036 = vadd.f32 %v313, %v818
      %v1037 = vadd.f32 %v314, %v823
      %v1038 = vadd.f32 %v315, %v828
      %v1039 = vadd.f32 %v316, %v833
      %v1040 = vadd.f32 %v317, %v838
      %v1041 = vadd.f32 %v318, %v843
      %v1042 = vadd.f32 %v319, %v848
      %v1043 = vadd.f32 %v320, %v853
      %v1044 = vadd.f32 %v321, %v858
      %v1045 = vadd.f32 %v322, %v863
      %v1046 = vadd.f32 %v323, %v868
      %v1047 = vadd.f32 %v324, %v873
      %v1048 = vadd.f32 %v325, %v878
      %v1049 = vadd.f32 %v326, %v883
      %v1050 = vadd.f32 %v327, %v888
      %v1051 = vadd.f32 %v328, %v893
      %v1052 = vadd.f32 %v329, %v898
      %v1053 = vadd.f32 %v330, %v903
      %v1054 = vadd.f32 %v331, %v908
      %v1055 = vadd.f32 %v332, %v913
      %v1056 = vadd.f32 %v333, %v918
      %v1057 = vadd.f32 %v334, %v923
      %v1058 = vadd.f32 %v335, %v928
      %v1059 = vadd.f32 %v336, %v933
      %v1060 = vadd.f32 %v337, %v938
      %v1061 = vadd.f32 %v338, %v943
      %v1062 = vadd.f32 %v339, %v948
      %v1063 = vadd.f32 %v340, %v953
      %v1064 = vadd.f32 %v341, %v958
      %v1065 = vadd.f32 %v342, %v963
      %v1066 = vadd.f32 %v343, %v968
      %v1067 = vadd.f32 %v344, %v973
      %v1068 = vadd.f32 %v345, %v978
      %v1069 = vadd.f32 %v346, %v983
      %v1070 = vadd.f32 %v347, %v988
      %v1071 = vadd.f32 %v348, %v993
      %v1072 = vadd.f32 %v349, %v998
      %v1073 = vadd.f32 %v350, %v1003
      %v1074 = vadd.f32 %v351, %v1008
      %vm1075 = vcmask 130048
      %1076 = vst.msk [vmem:[#allocation2] sm:$0xff] %vm1075, %v1011
      %1077 = vst.msk [vmem:[#allocation2 + $0x8] sm:$0xff] %vm1075, %v1012
      %1078 = vst.msk [vmem:[#allocation2 + $0x10] sm:$0xff] %vm1075, %v1013
      %1079 = vst.msk [vmem:[#allocation2 + $0x18] sm:$0xff] %vm1075, %v1014
      %1080 = vst.msk [vmem:[#allocation2 + $0x20] sm:$0xff] %vm1075, %v1015
      %1081 = vst.msk [vmem:[#allocation2 + $0x28] sm:$0xff] %vm1075, %v1016
      %1082 = vst.msk [vmem:[#allocation2 + $0x30] sm:$0xff] %vm1075, %v1017
      %1083 = vst.msk [vmem:[#allocation2 + $0x38] sm:$0xff] %vm1075, %v1018
      %1084 = vst.msk [vmem:[#allocation2 + $0x40] sm:$0xff] %vm1075, %v1019
      %1085 = vst.msk [vmem:[#allocation2 + $0x48] sm:$0xff] %vm1075, %v1020
      %1086 = vst.msk [vmem:[#allocation2 + $0x50] sm:$0xff] %vm1075, %v1021
      %1087 = vst.msk [vmem:[#allocation2 + $0x58] sm:$0xff] %vm1075, %v1022
      %1088 = vst.msk [vmem:[#allocation2 + $0x60] sm:$0xff] %vm1075, %v1023
      %1089 = vst.msk [vmem:[#allocation2 + $0x68] sm:$0xff] %vm1075, %v1024
      %1090 = vst.msk [vmem:[#allocation2 + $0x70] sm:$0xff] %vm1075, %v1025
      %1091 = vst.msk [vmem:[#allocation2 + $0x78] sm:$0xff] %vm1075, %v1026
      %1092 = vst.msk [vmem:[#allocation2 + $0x80] sm:$0xff] %vm1075, %v1027
      %1093 = vst.msk [vmem:[#allocation2 + $0x88] sm:$0xff] %vm1075, %v1028
      %1094 = vst.msk [vmem:[#allocation2 + $0x90] sm:$0xff] %vm1075, %v1029
      %1095 = vst.msk [vmem:[#allocation2 + $0x98] sm:$0xff] %vm1075, %v1030
      %1096 = vst.msk [vmem:[#allocation2 + $0xa0] sm:$0xff] %vm1075, %v1031
      %1097 = vst.msk [vmem:[#allocation2 + $0xa8] sm:$0xff] %vm1075, %v1032
      %1098 = vst.msk [vmem:[#allocation2 + $0xb0] sm:$0xff] %vm1075, %v1033
      %1099 = vst.msk [vmem:[#allocation2 + $0xb8] sm:$0xff] %vm1075, %v1034
      %1100 = vst.msk [vmem:[#allocation2 + $0xc0] sm:$0xff] %vm1075, %v1035
      %1101 = vst.msk [vmem:[#allocation2 + $0xc8] sm:$0xff] %vm1075, %v1036
      %1102 = vst.msk [vmem:[#allocation2 + $0xd0] sm:$0xff] %vm1075, %v1037
      %1103 = vst.msk [vmem:[#allocation2 + $0xd8] sm:$0xff] %vm1075, %v1038
      %1104 = vst.msk [vmem:[#allocation2 + $0xe0] sm:$0xff] %vm1075, %v1039
      %1105 = vst.msk [vmem:[#allocation2 + $0xe8] sm:$0xff] %vm1075, %v1040
      %1106 = vst.msk [vmem:[#allocation2 + $0xf0] sm:$0xff] %vm1075, %v1041
      %1107 = vst.msk [vmem:[#allocation2 + $0xf8] sm:$0xff] %vm1075, %v1042
      %1108 = vst.msk [vmem:[#allocation2 + $0x100] sm:$0xff] %vm1075, %v1043
      %1109 = vst.msk [vmem:[#allocation2 + $0x108] sm:$0xff] %vm1075, %v1044
      %1110 = vst.msk [vmem:[#allocation2 + $0x110] sm:$0xff] %vm1075, %v1045
      %1111 = vst.msk [vmem:[#allocation2 + $0x118] sm:$0xff] %vm1075, %v1046
      %1112 = vst.msk [vmem:[#allocation2 + $0x120] sm:$0xff] %vm1075, %v1047
      %1113 = vst.msk [vmem:[#allocation2 + $0x128] sm:$0xff] %vm1075, %v1048
      %1114 = vst.msk [vmem:[#allocation2 + $0x130] sm:$0xff] %vm1075, %v1049
      %1115 = vst.msk [vmem:[#allocation2 + $0x138] sm:$0xff] %vm1075, %v1050
      %1116 = vst.msk [vmem:[#allocation2 + $0x140] sm:$0xff] %vm1075, %v1051
      %1117 = vst.msk [vmem:[#allocation2 + $0x148] sm:$0xff] %vm1075, %v1052
      %1118 = vst.msk [vmem:[#allocation2 + $0x150] sm:$0xff] %vm1075, %v1053
      %1119 = vst.msk [vmem:[#allocation2 + $0x158] sm:$0xff] %vm1075, %v1054
      %1120 = vst.msk [vmem:[#allocation2 + $0x160] sm:$0xff] %vm1075, %v1055
      %1121 = vst.msk [vmem:[#allocation2 + $0x168] sm:$0xff] %vm1075, %v1056
      %1122 = vst.msk [vmem:[#allocation2 + $0x170] sm:$0xff] %vm1075, %v1057
      %1123 = vst.msk [vmem:[#allocation2 + $0x178] sm:$0xff] %vm1075, %v1058
      %1124 = vst.msk [vmem:[#allocation2 + $0x180] sm:$0xff] %vm1075, %v1059
      %1125 = vst.msk [vmem:[#allocation2 + $0x188] sm:$0xff] %vm1075, %v1060
      %1126 = vst.msk [vmem:[#allocation2 + $0x190] sm:$0xff] %vm1075, %v1061
      %1127 = vst.msk [vmem:[#allocation2 + $0x198] sm:$0xff] %vm1075, %v1062
      %1128 = vst.msk [vmem:[#allocation2 + $0x1a0] sm:$0xff] %vm1075, %v1063
      %1129 = vst.msk [vmem:[#allocation2 + $0x1a8] sm:$0xff] %vm1075, %v1064
      %1130 = vst.msk [vmem:[#allocation2 + $0x1b0] sm:$0xff] %vm1075, %v1065
      %1131 = vst.msk [vmem:[#allocation2 + $0x1b8] sm:$0xff] %vm1075, %v1066
      %1132 = vst.msk [vmem:[#allocation2 + $0x1c0] sm:$0xff] %vm1075, %v1067
      %1133 = vst.msk [vmem:[#allocation2 + $0x1c8] sm:$0xff] %vm1075, %v1068
      %1134 = vst.msk [vmem:[#allocation2 + $0x1d0] sm:$0xff] %vm1075, %v1069
      %1135 = vst.msk [vmem:[#allocation2 + $0x1d8] sm:$0xff] %vm1075, %v1070
      %1136 = vst.msk [vmem:[#allocation2 + $0x1e0] sm:$0xff] %vm1075, %v1071
      %1137 = vst.msk [vmem:[#allocation2 + $0x1e8] sm:$0xff] %vm1075, %v1072
      %1138 = vst.msk [vmem:[#allocation2 + $0x1f0] sm:$0xff] %vm1075, %v1073
      %1139 = vst.msk [vmem:[#allocation2 + $0x1f8] sm:$0xff] %vm1075, %v1074
      // Predicated region
      $region37: #{_lambda_.1} parent=31 // pred_check
        %p1140 = pneg %p219
      $region38: #{_lambda_.1} parent=31 // pred_check_branch
        %1142 = sbr.rel (%p1140) target = $region40
      $region39: #{_lambda_.1} parent=31 // pred_region
        %v1143 = vld [vmem:[#allocation2] sm:$0xff]
        %v1144 = vld [vmem:[#allocation2 + $0x8] sm:$0xff]
        %v1145 = vld [vmem:[#allocation2 + $0x10] sm:$0xff]
        %v1146 = vld [vmem:[#allocation2 + $0x18] sm:$0xff]
        %v1147 = vld [vmem:[#allocation2 + $0x20] sm:$0xff]
        %v1148 = vld [vmem:[#allocation2 + $0x28] sm:$0xff]
        %v1149 = vld [vmem:[#allocation2 + $0x30] sm:$0xff]
        %v1150 = vld [vmem:[#allocation2 + $0x38] sm:$0xff]
        %v1151 = vld [vmem:[#allocation2 + $0x40] sm:$0xff]
        %v1152 = vld [vmem:[#allocation2 + $0x48] sm:$0xff]
        %v1153 = vld [vmem:[#allocation2 + $0x50] sm:$0xff]
        %v1154 = vld [vmem:[#allocation2 + $0x58] sm:$0xff]
        %v1155 = vld [vmem:[#allocation2 + $0x60] sm:$0xff]
        %v1156 = vld [vmem:[#allocation2 + $0x68] sm:$0xff]
        %v1157 = vld [vmem:[#allocation2 + $0x70] sm:$0xff]
        %v1158 = vld [vmem:[#allocation2 + $0x78] sm:$0xff]
        %v1159 = vld [vmem:[#allocation2 + $0x80] sm:$0xff]
        %v1160 = vld [vmem:[#allocation2 + $0x88] sm:$0xff]
        %v1161 = vld [vmem:[#allocation2 + $0x90] sm:$0xff]
        %v1162 = vld [vmem:[#allocation2 + $0x98] sm:$0xff]
        %v1163 = vld [vmem:[#allocation2 + $0xa0] sm:$0xff]
        %v1164 = vld [vmem:[#allocation2 + $0xa8] sm:$0xff]
        %v1165 = vld [vmem:[#allocation2 + $0xb0] sm:$0xff]
        %v1166 = vld [vmem:[#allocation2 + $0xb8] sm:$0xff]
        %v1167 = vld [vmem:[#allocation2 + $0xc0] sm:$0xff]
        %v1168 = vld [vmem:[#allocation2 + $0xc8] sm:$0xff]
        %v1169 = vld [vmem:[#allocation2 + $0xd0] sm:$0xff]
        %v1170 = vld [vmem:[#allocation2 + $0xd8] sm:$0xff]
        %v1171 = vld [vmem:[#allocation2 + $0xe0] sm:$0xff]
        %v1172 = vld [vmem:[#allocation2 + $0xe8] sm:$0xff]
        %v1173 = vld [vmem:[#allocation2 + $0xf0] sm:$0xff]
        %v1174 = vld [vmem:[#allocation2 + $0xf8] sm:$0xff]
        %v1175 = vld [vmem:[#allocation2 + $0x100] sm:$0xff]
        %v1176 = vld [vmem:[#allocation2 + $0x108] sm:$0xff]
        %v1177 = vld [vmem:[#allocation2 + $0x110] sm:$0xff]
        %v1178 = vld [vmem:[#allocation2 + $0x118] sm:$0xff]
        %v1179 = vld [vmem:[#allocation2 + $0x120] sm:$0xff]
        %v1180 = vld [vmem:[#allocation2 + $0x128] sm:$0xff]
        %v1181 = vld [vmem:[#allocation2 + $0x130] sm:$0xff]
        %v1182 = vld [vmem:[#allocation2 + $0x138] sm:$0xff]
        %v1183 = vld [vmem:[#allocation2 + $0x140] sm:$0xff]
        %v1184 = vld [vmem:[#allocation2 + $0x148] sm:$0xff]
        %v1185 = vld [vmem:[#allocation2 + $0x150] sm:$0xff]
        %v1186 = vld [vmem:[#allocation2 + $0x158] sm:$0xff]
        %v1187 = vld [vmem:[#allocation2 + $0x160] sm:$0xff]
        %v1188 = vld [vmem:[#allocation2 + $0x168] sm:$0xff]
        %v1189 = vld [vmem:[#allocation2 + $0x170] sm:$0xff]
        %v1190 = vld [vmem:[#allocation2 + $0x178] sm:$0xff]
        %v1191 = vld [vmem:[#allocation2 + $0x180] sm:$0xff]
        %v1192 = vld [vmem:[#allocation2 + $0x188] sm:$0xff]
        %v1193 = vld [vmem:[#allocation2 + $0x190] sm:$0xff]
        %v1194 = vld [vmem:[#allocation2 + $0x198] sm:$0xff]
        %v1195 = vld [vmem:[#allocation2 + $0x1a0] sm:$0xff]
        %v1196 = vld [vmem:[#allocation2 + $0x1a8] sm:$0xff]
        %v1197 = vld [vmem:[#allocation2 + $0x1b0] sm:$0xff]
        %v1198 = vld [vmem:[#allocation2 + $0x1b8] sm:$0xff]
        %v1199 = vld [vmem:[#allocation2 + $0x1c0] sm:$0xff]
        %v1200 = vld [vmem:[#allocation2 + $0x1c8] sm:$0xff]
        %v1201 = vld [vmem:[#allocation2 + $0x1d0] sm:$0xff]
        %v1202 = vld [vmem:[#allocation2 + $0x1d8] sm:$0xff]
        %v1203 = vld [vmem:[#allocation2 + $0x1e0] sm:$0xff]
        %v1204 = vld [vmem:[#allocation2 + $0x1e8] sm:$0xff]
        %v1205 = vld [vmem:[#allocation2 + $0x1f0] sm:$0xff]
        %v1206 = vld [vmem:[#allocation2 + $0x1f8] sm:$0xff]
        %v1207 = vld [vmem:[%s2] sm:$0x1]
        %v1209 = vlaneseq
        %v1210 = vshrl.u32 %v1209, 7
        %v1211 = vsub.s32 0, %v1210
        %v1212 = vrot.slane %v1207, %v1211
        %v1214 = vadd.f32 %v1143, %v1212
        %v1215 = vadd.f32 %v1144, %v1212
        %v1216 = vadd.f32 %v1145, %v1212
        %v1217 = vadd.f32 %v1146, %v1212
        %v1218 = vadd.f32 %v1147, %v1212
        %v1219 = vadd.f32 %v1148, %v1212
        %v1220 = vadd.f32 %v1149, %v1212
        %v1221 = vadd.f32 %v1150, %v1212
        %v1222 = vadd.f32 %v1151, %v1212
        %v1223 = vadd.f32 %v1152, %v1212
        %v1224 = vadd.f32 %v1153, %v1212
        %v1225 = vadd.f32 %v1154, %v1212
        %v1226 = vadd.f32 %v1155, %v1212
        %v1227 = vadd.f32 %v1156, %v1212
        %v1228 = vadd.f32 %v1157, %v1212
        %v1229 = vadd.f32 %v1158, %v1212
        %v1230 = vadd.f32 %v1159, %v1212
        %v1231 = vadd.f32 %v1160, %v1212
        %v1232 = vadd.f32 %v1161, %v1212
        %v1233 = vadd.f32 %v1162, %v1212
        %v1234 = vadd.f32 %v1163, %v1212
        %v1235 = vadd.f32 %v1164, %v1212
        %v1236 = vadd.f32 %v1165, %v1212
        %v1237 = vadd.f32 %v1166, %v1212
        %v1238 = vadd.f32 %v1167, %v1212
        %v1239 = vadd.f32 %v1168, %v1212
        %v1240 = vadd.f32 %v1169, %v1212
        %v1241 = vadd.f32 %v1170, %v1212
        %v1242 = vadd.f32 %v1171, %v1212
        %v1243 = vadd.f32 %v1172, %v1212
        %v1244 = vadd.f32 %v1173, %v1212
        %v1245 = vadd.f32 %v1174, %v1212
        %v1246 = vadd.f32 %v1175, %v1212
        %v1247 = vadd.f32 %v1176, %v1212
        %v1248 = vadd.f32 %v1177, %v1212
        %v1249 = vadd.f32 %v1178, %v1212
        %v1250 = vadd.f32 %v1179, %v1212
        %v1251 = vadd.f32 %v1180, %v1212
        %v1252 = vadd.f32 %v1181, %v1212
        %v1253 = vadd.f32 %v1182, %v1212
        %v1254 = vadd.f32 %v1183, %v1212
        %v1255 = vadd.f32 %v1184, %v1212
        %v1256 = vadd.f32 %v1185, %v1212
        %v1257 = vadd.f32 %v1186, %v1212
        %v1258 = vadd.f32 %v1187, %v1212
        %v1259 = vadd.f32 %v1188, %v1212
        %v1260 = vadd.f32 %v1189, %v1212
        %v1261 = vadd.f32 %v1190, %v1212
        %v1262 = vadd.f32 %v1191, %v1212
        %v1263 = vadd.f32 %v1192, %v1212
        %v1264 = vadd.f32 %v1193, %v1212
        %v1265 = vadd.f32 %v1194, %v1212
        %v1266 = vadd.f32 %v1195, %v1212
        %v1267 = vadd.f32 %v1196, %v1212
        %v1268 = vadd.f32 %v1197, %v1212
        %v1269 = vadd.f32 %v1198, %v1212
        %v1270 = vadd.f32 %v1199, %v1212
        %v1271 = vadd.f32 %v1200, %v1212
        %v1272 = vadd.f32 %v1201, %v1212
        %v1273 = vadd.f32 %v1202, %v1212
        %v1274 = vadd.f32 %v1203, %v1212
        %v1275 = vadd.f32 %v1204, %v1212
        %v1276 = vadd.f32 %v1205, %v1212
        %v1277 = vadd.f32 %v1206, %v1212
        %1278 = vst.msk [vmem:[%s217] sm:$0xff] %vm1075, %v1214
        %1279 = vst.msk [vmem:[%s217 + $0x8] sm:$0xff] %vm1075, %v1215
        %1280 = vst.msk [vmem:[%s217 + $0x10] sm:$0xff] %vm1075, %v1216
        %1281 = vst.msk [vmem:[%s217 + $0x18] sm:$0xff] %vm1075, %v1217
        %1282 = vst.msk [vmem:[%s217 + $0x20] sm:$0xff] %vm1075, %v1218
        %1283 = vst.msk [vmem:[%s217 + $0x28] sm:$0xff] %vm1075, %v1219
        %1284 = vst.msk [vmem:[%s217 + $0x30] sm:$0xff] %vm1075, %v1220
        %1285 = vst.msk [vmem:[%s217 + $0x38] sm:$0xff] %vm1075, %v1221
        %1286 = vst.msk [vmem:[%s217 + $0x40] sm:$0xff] %vm1075, %v1222
        %1287 = vst.msk [vmem:[%s217 + $0x48] sm:$0xff] %vm1075, %v1223
        %1288 = vst.msk [vmem:[%s217 + $0x50] sm:$0xff] %vm1075, %v1224
        %1289 = vst.msk [vmem:[%s217 + $0x58] sm:$0xff] %vm1075, %v1225
        %1290 = vst.msk [vmem:[%s217 + $0x60] sm:$0xff] %vm1075, %v1226
        %1291 = vst.msk [vmem:[%s217 + $0x68] sm:$0xff] %vm1075, %v1227
        %1292 = vst.msk [vmem:[%s217 + $0x70] sm:$0xff] %vm1075, %v1228
        %1293 = vst.msk [vmem:[%s217 + $0x78] sm:$0xff] %vm1075, %v1229
        %1294 = vst.msk [vmem:[%s217 + $0x80] sm:$0xff] %vm1075, %v1230
        %1295 = vst.msk [vmem:[%s217 + $0x88] sm:$0xff] %vm1075, %v1231
        %1296 = vst.msk [vmem:[%s217 + $0x90] sm:$0xff] %vm1075, %v1232
        %1297 = vst.msk [vmem:[%s217 + $0x98] sm:$0xff] %vm1075, %v1233
        %1298 = vst.msk [vmem:[%s217 + $0xa0] sm:$0xff] %vm1075, %v1234
        %1299 = vst.msk [vmem:[%s217 + $0xa8] sm:$0xff] %vm1075, %v1235
        %1300 = vst.msk [vmem:[%s217 + $0xb0] sm:$0xff] %vm1075, %v1236
        %1301 = vst.msk [vmem:[%s217 + $0xb8] sm:$0xff] %vm1075, %v1237
        %1302 = vst.msk [vmem:[%s217 + $0xc0] sm:$0xff] %vm1075, %v1238
        %1303 = vst.msk [vmem:[%s217 + $0xc8] sm:$0xff] %vm1075, %v1239
        %1304 = vst.msk [vmem:[%s217 + $0xd0] sm:$0xff] %vm1075, %v1240
        %1305 = vst.msk [vmem:[%s217 + $0xd8] sm:$0xff] %vm1075, %v1241
        %1306 = vst.msk [vmem:[%s217 + $0xe0] sm:$0xff] %vm1075, %v1242
        %1307 = vst.msk [vmem:[%s217 + $0xe8] sm:$0xff] %vm1075, %v1243
        %1308 = vst.msk [vmem:[%s217 + $0xf0] sm:$0xff] %vm1075, %v1244
        %1309 = vst.msk [vmem:[%s217 + $0xf8] sm:$0xff] %vm1075, %v1245
        %1310 = vst.msk [vmem:[%s217 + $0x100] sm:$0xff] %vm1075, %v1246
        %1311 = vst.msk [vmem:[%s217 + $0x108] sm:$0xff] %vm1075, %v1247
        %1312 = vst.msk [vmem:[%s217 + $0x110] sm:$0xff] %vm1075, %v1248
        %1313 = vst.msk [vmem:[%s217 + $0x118] sm:$0xff] %vm1075, %v1249
        %1314 = vst.msk [vmem:[%s217 + $0x120] sm:$0xff] %vm1075, %v1250
        %1315 = vst.msk [vmem:[%s217 + $0x128] sm:$0xff] %vm1075, %v1251
        %1316 = vst.msk [vmem:[%s217 + $0x130] sm:$0xff] %vm1075, %v1252
        %1317 = vst.msk [vmem:[%s217 + $0x138] sm:$0xff] %vm1075, %v1253
        %1318 = vst.msk [vmem:[%s217 + $0x140] sm:$0xff] %vm1075, %v1254
        %1319 = vst.msk [vmem:[%s217 + $0x148] sm:$0xff] %vm1075, %v1255
        %1320 = vst.msk [vmem:[%s217 + $0x150] sm:$0xff] %vm1075, %v1256
        %1321 = vst.msk [vmem:[%s217 + $0x158] sm:$0xff] %vm1075, %v1257
        %1322 = vst.msk [vmem:[%s217 + $0x160] sm:$0xff] %vm1075, %v1258
        %1323 = vst.msk [vmem:[%s217 + $0x168] sm:$0xff] %vm1075, %v1259
        %1324 = vst.msk [vmem:[%s217 + $0x170] sm:$0xff] %vm1075, %v1260
        %1325 = vst.msk [vmem:[%s217 + $0x178] sm:$0xff] %vm1075, %v1261
        %1326 = vst.msk [vmem:[%s217 + $0x180] sm:$0xff] %vm1075, %v1262
        %1327 = vst.msk [vmem:[%s217 + $0x188] sm:$0xff] %vm1075, %v1263
        %1328 = vst.msk [vmem:[%s217 + $0x190] sm:$0xff] %vm1075, %v1264
        %1329 = vst.msk [vmem:[%s217 + $0x198] sm:$0xff] %vm1075, %v1265
        %1330 = vst.msk [vmem:[%s217 + $0x1a0] sm:$0xff] %vm1075, %v1266
        %1331 = vst.msk [vmem:[%s217 + $0x1a8] sm:$0xff] %vm1075, %v1267
        %1332 = vst.msk [vmem:[%s217 + $0x1b0] sm:$0xff] %vm1075, %v1268
        %1333 = vst.msk [vmem:[%s217 + $0x1b8] sm:$0xff] %vm1075, %v1269
        %1334 = vst.msk [vmem:[%s217 + $0x1c0] sm:$0xff] %vm1075, %v1270
        %1335 = vst.msk [vmem:[%s217 + $0x1c8] sm:$0xff] %vm1075, %v1271
        %1336 = vst.msk [vmem:[%s217 + $0x1d0] sm:$0xff] %vm1075, %v1272
        %1337 = vst.msk [vmem:[%s217 + $0x1d8] sm:$0xff] %vm1075, %v1273
        %1338 = vst.msk [vmem:[%s217 + $0x1e0] sm:$0xff] %vm1075, %v1274
        %1339 = vst.msk [vmem:[%s217 + $0x1e8] sm:$0xff] %vm1075, %v1275
        %1340 = vst.msk [vmem:[%s217 + $0x1f0] sm:$0xff] %vm1075, %v1276
        %1341 = vst.msk [vmem:[%s217 + $0x1f8] sm:$0xff] %vm1075, %v1277
      $region40: #{_lambda_.1} parent=31 // pred_fallthru
        _
      %s1342 = smul.u32 64, %s18
      %p1343 = scmp.lt.s32.totalorder %s1342, 127
      %s1344 = scalar_select %p1343, %s1342, 127
      %s1345 = smul.addr %s1344, 8
      %s1346 = scalar_lea.vmem %s3, %s1345
      // Predicated region
      $region41: #{_lambda_.1} parent=31 // pred_check
        %p1347 = pneg %p119
      $region42: #{_lambda_.1} parent=31 // pred_check_branch
        %1349 = sbr.rel (%p1347) target = $region44
      $region43: #{_lambda_.1} parent=31 // pred_region
        %s1350 = smul.u32 64, %s18
      $region44: #{_lambda_.1} parent=31 // pred_fallthru
        _
    $region32: #{_lambda_.1} parent=5 // pred_fallthru
      _
    %p1351 = scmp.le.s32.totalorder 2, %s9
    // Predicated region
    $region45: #{_lambda_.1} parent=5 // pred_check
      %p1352 = pneg %p1351
    $region46: #{_lambda_.1} parent=5 // pred_check_branch
      %1354 = sbr.rel (%p1352) target = $region48
    $region47: #{_lambda_.1} parent=5 // pred_region
      %s1355 = ssub.s32 %s9, 2
      // Predicated region
      $region49: #{_lambda_.1} parent=47 // pred_check
        %p1356 = pneg %p125
      $region50: #{_lambda_.1} parent=47 // pred_check_branch
        %1358 = sbr.rel (%p1356) target = $region52
      $region51: #{_lambda_.1} parent=47 // pred_region
        %s1359 = smul.u32 64, %s20
        %p1360 = scmp.lt.s32.totalorder %s1359, 127
        %s1361 = scalar_select %p1360, %s1359, 127
        %s1362 = smul.addr %s1361, 8
        %s1363 = scalar_lea.vmem %s3, %s1362
      $region52: #{_lambda_.1} parent=47 // pred_fallthru
        _
    $region48: #{_lambda_.1} parent=5 // pred_fallthru
      _
  $region6: #{_lambda_.1} parent=0 // loop_footer
    %s13 = sadd.s32 1, %s9
  $region7: #{_lambda_.1} parent=0 // loop_footer_branch
    %8 = sbr.rel target = $region3
  $region8: #{_lambda_.1} parent=0 // loop_exit
    _

</llo_original>
